<compile_context>
chip_gen: v6e
topology: v6e:2x2x1
jax: 0.10.0
libtpu: 0.0.40
codegen_flags: <defaults>
</compile_context>

<pallas_src>
import math
from functools import partial
from typing import NamedTuple

import jax
import jax.numpy as jnp
from jax.experimental import pallas as pl
from jax.experimental.pallas import tpu as pltpu

BN_EPS = 1e-5  # PyTorch BatchNorm1d default


def _round_up(x, m):
    return ((x + m - 1) // m) * m


class PackPlan(NamedTuple):
    """Static (hashable) packing metadata shared by pack_params and the kernel."""
    pdims: tuple        # padded feature dims (in, h1, h2, h3, out), multiples of 128
    w_slots: tuple      # per layer: (row_off, col_off, in_pad, out_pad) in the weight buffer
    w_shape: tuple      # packed bf16 weight buffer shape
    misc_shape: tuple   # packed f32 scale/shift/bias buffer shape
    num_classes: int    # real number of output classes


def _plan_weight_packing(wshapes):
    """Greedy 2-D shelf packing of the (in_pad, out_pad) weight matrices into one
    buffer.  Matrices are placed in column strips (widest first); a matrix joins
    an existing strip only if it wastes <50% of the strip width, else it opens a
    new strip.  All offsets stay multiples of (128, 128) -> tile aligned."""
    strips = []                       # each: {"col0", "width", "height"}
    slots = [None] * len(wshapes)
    col_cursor = 0
    for k in sorted(range(len(wshapes)), key=lambda i: -wshapes[i][1]):
        ip, op = wshapes[k]
        placed = False
        for s in strips:
            if s["width"] >= op and 2 * op >= s["width"]:
                slots[k] = (s["height"], s["col0"], ip, op)
                s["height"] += ip
                placed = True
                break
        if not placed:
            strips.append({"col0": col_cursor, "width": op, "height": ip})
            slots[k] = (0, col_cursor, ip, op)
            col_cursor += op
    rows = max(s["height"] for s in strips)
    cols = col_cursor
    return rows, cols, tuple(slots)


def pack_params(params, in_features):
    """ONE-TIME preprocessing (keep the result; don't call per forward):
       * binarize W (transposed to (in, out)) and bias; W stored as bf16
       * fold BN: scale = gamma/sqrt(var+eps), shift = beta - mean*scale + sign(b)*scale
       * pack all weights into one bf16 buffer, all scale/shift + final bias into
         one f32 buffer, zero-padded to lane/sublane tiles.
    Note: jnp.sign(0) = 0, exactly matching torch.Tensor.sign() used by binarize()."""
    dims = [int(in_features)] + [int(p["w"].shape[0]) for p in params]
    pdims = [_round_up(d, 128) for d in dims]
    wshapes = [(pdims[i], pdims[i + 1]) for i in range(len(params))]
    wr, wc, slots = _plan_weight_packing(wshapes)

    w_buf = jnp.zeros((wr, wc), jnp.bfloat16)
    for k, p in enumerate(params):
        r0, c0, _, _ = slots[k]
        wb = jnp.sign(p["w"].astype(jnp.float32)).T          # (in_real, out_real) in {-1,0,1}
        w_buf = w_buf.at[r0:r0 + wb.shape[0], c0:c0 + wb.shape[1]].set(
            wb.astype(jnp.bfloat16))

    n_bn = sum(1 for p in params if "gamma" in p)
    mrows = _round_up(2 * n_bn + 1, 8)
    mcols = max(pdims[1:])
    misc = jnp.zeros((mrows, mcols), jnp.float32)
    bn_row = 0
    for p in params:
        bb = jnp.sign(p["b"].astype(jnp.float32))             # binarized bias
        if "gamma" in p:                                      # layers 1-3: fold BN (+bias)
            scale = p["gamma"].astype(jnp.float32) / jnp.sqrt(
                p["var"].astype(jnp.float32) + BN_EPS)
            shift = (p["beta"].astype(jnp.float32)
                     - p["mean"].astype(jnp.float32) * scale + bb * scale)
            misc = misc.at[bn_row, :scale.shape[0]].set(scale)
            misc = misc.at[bn_row + 1, :shift.shape[0]].set(shift)
            bn_row += 2
        else:                                                 # final layer: bias only
            misc = misc.at[2 * n_bn, :bb.shape[0]].set(bb)

    plan = PackPlan(pdims=tuple(pdims), w_slots=slots, w_shape=(wr, wc),
                    misc_shape=(mrows, mcols), num_classes=dims[-1])
    return w_buf, misc, plan


def _make_kernel(plan):
    """Fused (bf16 matmul -> folded BN scale/shift -> hardtanh) x3 -> final matmul."""
    n_layers = len(plan.w_slots)
    n_bn = n_layers - 1
    bias_row = 2 * n_bn

    def kernel(x_ref, w_ref, misc_ref, out_ref):
        def w_view(k):
            r0, c0, ip, op = plan.w_slots[k]
            # Static, (128,128)-aligned sub-tile of the packed weight buffer.
            return w_ref[r0:r0 + ip, c0:c0 + op]

        h = x_ref[...]                                        # (bt, in_pad) bf16
        for k in range(n_bn):
            op = plan.pdims[k + 1]
            # MXU: bf16 x bf16 -> f32 accumulation (native rate on all generations).
            z = jnp.dot(h, w_view(k), preferred_element_type=jnp.float32)
            scale = misc_ref[2 * k:2 * k + 1, :op]            # (1, op) f32, VPU-broadcast
            shift = misc_ref[2 * k + 1:2 * k + 2, :op]        # bias + BN folded in
            h = jnp.clip(z * scale + shift, -1.0, 1.0).astype(jnp.bfloat16)
        op = plan.pdims[-1]
        z = jnp.dot(h, w_view(n_layers - 1), preferred_element_type=jnp.float32)
        out_ref[...] = z + misc_ref[bias_row:bias_row + 1, :op]

    return kernel


@partial(jax.jit, static_argnames=("plan",))
def bnn_mlp_forward(x_nchw, w_buf, misc, *, plan):
    """Forward matching NeuralNetwork.forward (BN in eval mode).  The NCHW flatten,
    the zero-pad, the fused kernel and the unpad slice are one jitted dispatch."""
    n = x_nchw.shape[0]
    feat = math.prod(x_nchw.shape[1:])
    in_pad, out_pad = plan.pdims[0], plan.pdims[-1]

    bt = min(_round_up(n, 16), 512)          # batch tile (bf16 sublane aligned)
    bpad = _round_up(n, bt)

    x2d = x_nchw.reshape(n, feat).astype(jnp.bfloat16)
    x_pad = jnp.zeros((bpad, in_pad), jnp.bfloat16).at[:n, :feat].set(x2d)

    out = pl.pallas_call(
        _make_kernel(plan),
        out_shape=jax.ShapeDtypeStruct((bpad, out_pad), jnp.float32),
        grid=(bpad // bt,),
        in_specs=[
            pl.BlockSpec((bt, in_pad), lambda i: (i, 0)),      # batch tile of x
            pl.BlockSpec(plan.w_shape, lambda i: (0, 0)),      # weights: VMEM-resident
            pl.BlockSpec(plan.misc_shape, lambda i: (0, 0)),   # BN/bias: VMEM-resident
        ],
        out_specs=pl.BlockSpec((bt, out_pad), lambda i: (i, 0)),
        compiler_params=pltpu.CompilerParams(
            dimension_semantics=("parallel",)),                # shards tiles over TCs (v7x)
    )(x_pad, w_buf, misc)
    return out[:n, :plan.num_classes]


def reference_forward(x_nchw, params, mxu_dtype=jnp.float32):
    """Pure-JAX mirror of the PyTorch module (BN in eval mode).  With
    mxu_dtype=jnp.bfloat16 it reproduces the kernel's matmul-input precision."""
    h = x_nchw.reshape(x_nchw.shape[0], -1).astype(jnp.float32)
    for p in params:
        w = jnp.sign(p["w"].astype(jnp.float32))
        b = jnp.sign(p["b"].astype(jnp.float32))
        h = jnp.dot(h.astype(mxu_dtype), w.T.astype(mxu_dtype),
                    preferred_element_type=jnp.float32) + b
        if "gamma" in p:
            h = (h - p["mean"]) / jnp.sqrt(p["var"] + BN_EPS) * p["gamma"] + p["beta"]
            h = jnp.clip(h, -1.0, 1.0)
    return h


def make_params(key, input_size, hidden_size, num_classes):
    layer_dims = [(input_size, hidden_size), (hidden_size, 400),
                  (400, 300), (300, num_classes)]
    params = []
    for li, (fan_in, fan_out) in enumerate(layer_dims):
        key, k_w, k_b, k_g, k_be, k_m, k_v = jax.random.split(key, 7)
        bound = 1.0 / math.sqrt(fan_in)
        p = {
            "w": jax.random.uniform(k_w, (fan_out, fan_in), jnp.float32, -bound, bound),
            "b": jax.random.uniform(k_b, (fan_out,), jnp.float32, -bound, bound),
        }
        if li < 3:  # BN only after layers 1-3
            # TODO(synk): BatchNorm1d implemented in eval mode (running stats);
            # training-mode batch statistics are not reproduced here.
            p["gamma"] = jax.random.uniform(k_g, (fan_out,), jnp.float32, 0.5, 1.5)
            p["beta"] = jax.random.uniform(k_be, (fan_out,), jnp.float32, -0.5, 0.5)
            p["mean"] = 0.1 * jax.random.normal(k_m, (fan_out,), jnp.float32)
            p["var"] = jax.random.uniform(k_v, (fan_out,), jnp.float32, 0.5, 1.5)
        params.append(p)
    return params


if __name__ == "__main__":
    # example_data shape (N, C, H, W) = (2, 1, 16, 16) -> input_size = 256
    N, C, H, W = 2, 1, 16, 16
    input_size = C * H * W
    hidden_size = 32
    num_classes = 8  # len(commands)

    key = jax.random.PRNGKey(0)
    key, kx = jax.random.split(key)
    x = jax.random.normal(kx, (N, C, H, W), jnp.float32)
    params = make_params(key, input_size, hidden_size, num_classes)

    # One-time packing (binarize + BN fold + pad + pack into 2 buffers).
    w_buf, misc, plan = pack_params(params, input_size)

    out = bnn_mlp_forward(x, w_buf, misc, plan=plan)
    out = jax.block_until_ready(out)
    assert out.shape == (N, num_classes), out.shape

    # Precision-matched reference: same bf16 matmul inputs as the kernel; the
    # remaining difference is only f32 accumulation order / BN-fold rounding.
    ref = reference_forward(x, params, mxu_dtype=jnp.bfloat16)
    assert jnp.allclose(out, ref, atol=5e-2, rtol=1e-2), (
        f"max abs err {float(jnp.max(jnp.abs(out - ref)))}")
    print("KERNEL_OK")
</pallas_src>

<mosaic_0001>
module attributes {stable_mosaic.version = 11 : i64} {
  func.func @kernel(%arg0: i32, %arg1: memref<16x256xbf16, #tpu.memory_space<vmem>>, %arg2: memref<640x640xbf16, #tpu.memory_space<vmem>>, %arg3: memref<8x512xf32, #tpu.memory_space<vmem>>, %arg4: memref<16x128xf32, #tpu.memory_space<vmem>>) attributes {dimension_semantics = [#tpu.dimension_semantics<parallel>], iteration_bounds = array<i64: 1>, scalar_prefetch = 0 : i64, scratch_operands = 0 : i64, tpu.core_type = #tpu.core_type<tc>, window_params = [{transform_indices = @transform_0, window_bounds = array<i64: 16, 256>}, {pipeline_mode = #tpu.pipeline_mode<synchronous>, transform_indices = @transform_1, window_bounds = array<i64: 640, 640>}, {pipeline_mode = #tpu.pipeline_mode<synchronous>, transform_indices = @transform_2, window_bounds = array<i64: 8, 512>}, {transform_indices = @transform_3, window_bounds = array<i64: 16, 128>}]} {
    %c0 = arith.constant 0 : index
    %c0_0 = arith.constant 0 : index
    %0 = vector.load %arg1[%c0, %c0_0] : memref<16x256xbf16, #tpu.memory_space<vmem>>, vector<16x256xbf16>
    %c0_1 = arith.constant 0 : index
    %c512 = arith.constant 512 : index
    %1 = vector.load %arg2[%c0_1, %c512] : memref<640x640xbf16, #tpu.memory_space<vmem>>, vector<256x128xbf16>
    %cst = arith.constant dense<0.000000e+00> : vector<16x128xf32>
    %2 = tpu.matmul %0, %1, %cst {dimension_numbers = #tpu.dot_dimension_numbers<[1], [0], [0], [1], [0, 0, 1, 1], [], []>} : vector<16x256xbf16>, vector<256x128xbf16>, vector<16x128xf32> -> vector<16x128xf32>
    %c0_2 = arith.constant 0 : index
    %c0_3 = arith.constant 0 : index
    %3 = vector.load %arg3[%c0_2, %c0_3] : memref<8x512xf32, #tpu.memory_space<vmem>>, vector<1x128xf32>
    %c1 = arith.constant 1 : index
    %c0_4 = arith.constant 0 : index
    %4 = vector.load %arg3[%c1, %c0_4] : memref<8x512xf32, #tpu.memory_space<vmem>>, vector<1x128xf32>
    %5 = vector.broadcast %3 : vector<1x128xf32> to vector<16x128xf32>
    %6 = arith.mulf %2, %5 : vector<16x128xf32>
    %7 = vector.broadcast %4 : vector<1x128xf32> to vector<16x128xf32>
    %8 = arith.addf %6, %7 : vector<16x128xf32>
    %cst_5 = arith.constant -1.000000e+00 : f32
    %cst_6 = arith.constant 1.000000e+00 : f32
    %9 = vector.broadcast %cst_5 : f32 to vector<16x128xf32>
    %10 = arith.maximumf %9, %8 : vector<16x128xf32>
    %11 = vector.broadcast %cst_6 : f32 to vector<16x128xf32>
    %12 = arith.minimumf %11, %10 : vector<16x128xf32>
    %13 = arith.truncf %12 : vector<16x128xf32> to vector<16x128xbf16>
    %c0_7 = arith.constant 0 : index
    %c0_8 = arith.constant 0 : index
    %14 = vector.load %arg2[%c0_7, %c0_8] : memref<640x640xbf16, #tpu.memory_space<vmem>>, vector<128x512xbf16>
    %cst_9 = arith.constant dense<0.000000e+00> : vector<16x512xf32>
    %15 = tpu.matmul %13, %14, %cst_9 {dimension_numbers = #tpu.dot_dimension_numbers<[1], [0], [0], [1], [0, 0, 1, 1], [], []>} : vector<16x128xbf16>, vector<128x512xbf16>, vector<16x512xf32> -> vector<16x512xf32>
    %c2 = arith.constant 2 : index
    %c0_10 = arith.constant 0 : index
    %16 = vector.load %arg3[%c2, %c0_10] : memref<8x512xf32, #tpu.memory_space<vmem>>, vector<1x512xf32>
    %c3 = arith.constant 3 : index
    %c0_11 = arith.constant 0 : index
    %17 = vector.load %arg3[%c3, %c0_11] : memref<8x512xf32, #tpu.memory_space<vmem>>, vector<1x512xf32>
    %18 = vector.broadcast %16 : vector<1x512xf32> to vector<16x512xf32>
    %19 = arith.mulf %15, %18 : vector<16x512xf32>
    %20 = vector.broadcast %17 : vector<1x512xf32> to vector<16x512xf32>
    %21 = arith.addf %19, %20 : vector<16x512xf32>
    %cst_12 = arith.constant -1.000000e+00 : f32
    %cst_13 = arith.constant 1.000000e+00 : f32
    %22 = vector.broadcast %cst_12 : f32 to vector<16x512xf32>
    %23 = arith.maximumf %22, %21 : vector<16x512xf32>
    %24 = vector.broadcast %cst_13 : f32 to vector<16x512xf32>
    %25 = arith.minimumf %24, %23 : vector<16x512xf32>
    %26 = arith.truncf %25 : vector<16x512xf32> to vector<16x512xbf16>
    %c128 = arith.constant 128 : index
    %c0_14 = arith.constant 0 : index
    %27 = vector.load %arg2[%c128, %c0_14] : memref<640x640xbf16, #tpu.memory_space<vmem>>, vector<512x384xbf16>
    %cst_15 = arith.constant dense<0.000000e+00> : vector<16x384xf32>
    %28 = tpu.matmul %26, %27, %cst_15 {dimension_numbers = #tpu.dot_dimension_numbers<[1], [0], [0], [1], [0, 0, 1, 1], [], []>} : vector<16x512xbf16>, vector<512x384xbf16>, vector<16x384xf32> -> vector<16x384xf32>
    %c4 = arith.constant 4 : index
    %c0_16 = arith.constant 0 : index
    %29 = vector.load %arg3[%c4, %c0_16] : memref<8x512xf32, #tpu.memory_space<vmem>>, vector<1x384xf32>
    %c5 = arith.constant 5 : index
    %c0_17 = arith.constant 0 : index
    %30 = vector.load %arg3[%c5, %c0_17] : memref<8x512xf32, #tpu.memory_space<vmem>>, vector<1x384xf32>
    %31 = vector.broadcast %29 : vector<1x384xf32> to vector<16x384xf32>
    %32 = arith.mulf %28, %31 : vector<16x384xf32>
    %33 = vector.broadcast %30 : vector<1x384xf32> to vector<16x384xf32>
    %34 = arith.addf %32, %33 : vector<16x384xf32>
    %cst_18 = arith.constant -1.000000e+00 : f32
    %cst_19 = arith.constant 1.000000e+00 : f32
    %35 = vector.broadcast %cst_18 : f32 to vector<16x384xf32>
    %36 = arith.maximumf %35, %34 : vector<16x384xf32>
    %37 = vector.broadcast %cst_19 : f32 to vector<16x384xf32>
    %38 = arith.minimumf %37, %36 : vector<16x384xf32>
    %39 = arith.truncf %38 : vector<16x384xf32> to vector<16x384xbf16>
    %c256 = arith.constant 256 : index
    %c512_20 = arith.constant 512 : index
    %40 = vector.load %arg2[%c256, %c512_20] : memref<640x640xbf16, #tpu.memory_space<vmem>>, vector<384x128xbf16>
    %cst_21 = arith.constant dense<0.000000e+00> : vector<16x128xf32>
    %41 = tpu.matmul %39, %40, %cst_21 {dimension_numbers = #tpu.dot_dimension_numbers<[1], [0], [0], [1], [0, 0, 1, 1], [], []>} : vector<16x384xbf16>, vector<384x128xbf16>, vector<16x128xf32> -> vector<16x128xf32>
    %c6 = arith.constant 6 : index
    %c0_22 = arith.constant 0 : index
    %42 = vector.load %arg3[%c6, %c0_22] : memref<8x512xf32, #tpu.memory_space<vmem>>, vector<1x128xf32>
    %43 = vector.broadcast %42 : vector<1x128xf32> to vector<16x128xf32>
    %44 = arith.addf %41, %43 : vector<16x128xf32>
    %c0_23 = arith.constant 0 : index
    %c0_24 = arith.constant 0 : index
    %45 = vector.load %arg4[%c0_23, %c0_24] : memref<16x128xf32, #tpu.memory_space<vmem>>, vector<16x128xf32>
    tpu.vector_store %arg4[%c0_23, %c0_24], %44 {strides = array<i32>} : memref<16x128xf32, #tpu.memory_space<vmem>>, vector<16x128xf32>,
    return
  }
  func.func @transform_0(%arg0: i32) -> (i32, i32) {
    %c0_i32 = arith.constant 0 : i32
    %c0_i32_0 = arith.constant 0 : i32
    return %arg0, %c0_i32 : i32, i32
  }
  func.func @transform_1(%arg0: i32) -> (i32, i32) {
    %c0_i32 = arith.constant 0 : i32
    %c0_i32_0 = arith.constant 0 : i32
    %c0_i32_1 = arith.constant 0 : i32
    return %c0_i32, %c0_i32_0 : i32, i32
  }
  func.func @transform_2(%arg0: i32) -> (i32, i32) {
    %c0_i32 = arith.constant 0 : i32
    %c0_i32_0 = arith.constant 0 : i32
    %c0_i32_1 = arith.constant 0 : i32
    return %c0_i32, %c0_i32_0 : i32, i32
  }
  func.func @transform_3(%arg0: i32) -> (i32, i32) {
    %c0_i32 = arith.constant 0 : i32
    %c0_i32_0 = arith.constant 0 : i32
    return %arg0, %c0_i32 : i32, i32
  }
}

</mosaic_0001>

<llo_original>
// kernel: bnn_mlp_forward.1
$region0: #{bnn_mlp_forward.1}
  #allocation0 [shape = 'u32[]', space=smem, size = 0x4, offset = 0x4, fixed_abs, tag = 'smem constant byte address 0x4 - core index']
  #allocation1 [shape = 'u32[144,128]{1,0:T(1,128)}', space=vmem, size = 0x12000, scoped, tag = 'internal scratch']
  %s0 = inlined_call_operand.vmem [shape: bf16[16,256], index: 0, kind: input, shape index: {}]
  %s1 = inlined_call_operand.hbm [shape: bf16[640,640], index: 1, kind: input, shape index: {}]
  %s2 = inlined_call_operand.vmem [shape: f32[8,512], index: 2, kind: input, shape index: {}]
  %s3 = inlined_call_operand.vmem [shape: f32[16,128], index: 3, kind: output, shape index: {}]
  %s4 = sld [smem:[#allocation0]]
  $region26: #{bnn_mlp_forward.1} parent=0
    _
  %s6 = ssub.s32 1, %s4
  %s7 = scalar_select 0, %s6, %s4
  $region1: #{bnn_mlp_forward.1} parent=0
    #allocation2 [shape = 'u8[819200]{0}', space=vmem, size = 0xc8000, scoped, tag = 'input window, operand 1, single buffered']
    #allocation3 [shape = 's32[1]{0}', space=sflag, size = 0x4, scoped, tag = 'scoped memory for bnn_mlp_forward.1']
    %8 = vsyncpa [#allocation3], 0
    // Predicated region
    $region2: #{bnn_mlp_forward.1} parent=1 // pred_check
      _
    $region3: #{bnn_mlp_forward.1} parent=1 // pred_check_branch
      %10 = sbr.rel (0) target = $region5
    $region4: #{bnn_mlp_forward.1} parent=1 // pred_region
      _
    $region5: #{bnn_mlp_forward.1} parent=1 // pred_fallthru
      _
    // Predicated region
    $region6: #{bnn_mlp_forward.1} parent=1 // pred_check
      _
    $region7: #{bnn_mlp_forward.1} parent=1 // pred_check_branch
      %12 = sbr.rel (0) target = $region9
    $region8: #{bnn_mlp_forward.1} parent=1 // pred_region
      %s14 = ssub.s32 25600, 25600
      %15 = vsyncadd [#allocation3], %s14
      %s16 = sshll.u32 [#allocation2], 4
      %s17 = int_to_ptr.vmem [resolvable:$true] %s16
      %22 = dma.hbm_to_vmem [thread:$0]  %s1, 25600, %s17, [#allocation3], 320, 320, 20
    $region9: #{bnn_mlp_forward.1} parent=1 // pred_fallthru
      _
    // Predicated region
    $region10: #{bnn_mlp_forward.1} parent=1 // pred_check
      _
    $region11: #{bnn_mlp_forward.1} parent=1 // pred_check_branch
      %24 = sbr.rel (0) target = $region13
    $region12: #{bnn_mlp_forward.1} parent=1 // pred_region
      _
    $region13: #{bnn_mlp_forward.1} parent=1 // pred_fallthru
      _
    // Predicated region
    $region14: #{bnn_mlp_forward.1} parent=1 // pred_check
      _
    $region15: #{bnn_mlp_forward.1} parent=1 // pred_check_branch
      %26 = sbr.rel (0) target = $region17
    $region16: #{bnn_mlp_forward.1} parent=1 // pred_region
      %27 = dma.done [#allocation3], 25600
    $region17: #{bnn_mlp_forward.1} parent=1 // pred_fallthru
      _
    %v29 = vld [vmem:[%s0] sm:$0xff]
    %v30 = vld [vmem:[%s0 + $0x8] sm:$0xff]
    %v31 = vld [vmem:[#allocation2 + $0x10] sm:$0xf]
    %v32 = vld [vmem:[#allocation2 + $0x24] sm:$0xf]
    %v33 = vld [vmem:[#allocation2 + $0x38] sm:$0xf]
    %v34 = vld [vmem:[#allocation2 + $0x4c] sm:$0xf]
    %v35 = vld [vmem:[#allocation2 + $0x60] sm:$0xf]
    %v36 = vld [vmem:[#allocation2 + $0x74] sm:$0xf]
    %v37 = vld [vmem:[#allocation2 + $0x88] sm:$0xf]
    %v38 = vld [vmem:[#allocation2 + $0x9c] sm:$0xf]
    %v39 = vld [vmem:[#allocation2 + $0xb0] sm:$0xf]
    %v40 = vld [vmem:[#allocation2 + $0xc4] sm:$0xf]
    %v41 = vld [vmem:[#allocation2 + $0xd8] sm:$0xf]
    %v42 = vld [vmem:[#allocation2 + $0xec] sm:$0xf]
    %v43 = vld [vmem:[#allocation2 + $0x100] sm:$0xf]
    %v44 = vld [vmem:[#allocation2 + $0x114] sm:$0xf]
    %v45 = vld [vmem:[#allocation2 + $0x128] sm:$0xf]
    %v46 = vld [vmem:[#allocation2 + $0x13c] sm:$0xf]
    %v47 = vld [vmem:[#allocation2 + $0x150] sm:$0xf]
    %v48 = vld [vmem:[#allocation2 + $0x164] sm:$0xf]
    %v49 = vld [vmem:[#allocation2 + $0x178] sm:$0xf]
    %v50 = vld [vmem:[#allocation2 + $0x18c] sm:$0xf]
    %v51 = vld [vmem:[#allocation2 + $0x1a0] sm:$0xf]
    %v52 = vld [vmem:[#allocation2 + $0x1b4] sm:$0xf]
    %v53 = vld [vmem:[#allocation2 + $0x1c8] sm:$0xf]
    %v54 = vld [vmem:[#allocation2 + $0x1dc] sm:$0xf]
    %v55 = vld [vmem:[#allocation2 + $0x1f0] sm:$0xf]
    %v56 = vld [vmem:[#allocation2 + $0x204] sm:$0xf]
    %v57 = vld [vmem:[#allocation2 + $0x218] sm:$0xf]
    %v58 = vld [vmem:[#allocation2 + $0x22c] sm:$0xf]
    %v59 = vld [vmem:[#allocation2 + $0x240] sm:$0xf]
    %v60 = vld [vmem:[#allocation2 + $0x254] sm:$0xf]
    %v61 = vld [vmem:[#allocation2 + $0x268] sm:$0xf]
    %v62 = vld [vmem:[#allocation2 + $0x27c] sm:$0xf]
    %v65 = vunpack.c.l.b16 %v29
    %v66 = vunpack.c.h.b16 %v29
    %v67 = vunpack.c.l.b16 %v30
    %v68 = vunpack.c.h.b16 %v30
    %v69 = vpack.c.b16 %v67, %v65
    %v70 = vpack.c.b16 %v68, %v66
    %v105 = vunpack.c.l.b16 %v31
    %v106 = vunpack.c.l.b16 %v32
    %v107 = vunpack.c.l.b16 %v33
    %v108 = vunpack.c.l.b16 %v34
    %v109 = vunpack.c.l.b16 %v35
    %v110 = vunpack.c.l.b16 %v36
    %v111 = vunpack.c.l.b16 %v37
    %v112 = vunpack.c.l.b16 %v38
    %v113 = vunpack.c.l.b16 %v39
    %v114 = vunpack.c.l.b16 %v40
    %v115 = vunpack.c.l.b16 %v41
    %v116 = vunpack.c.l.b16 %v42
    %v117 = vunpack.c.l.b16 %v43
    %v118 = vunpack.c.l.b16 %v44
    %v119 = vunpack.c.l.b16 %v45
    %v120 = vunpack.c.l.b16 %v46
    %v121 = vunpack.c.l.b16 %v47
    %v122 = vunpack.c.l.b16 %v48
    %v123 = vunpack.c.l.b16 %v49
    %v124 = vunpack.c.l.b16 %v50
    %v125 = vunpack.c.l.b16 %v51
    %v126 = vunpack.c.l.b16 %v52
    %v127 = vunpack.c.l.b16 %v53
    %v128 = vunpack.c.l.b16 %v54
    %v129 = vunpack.c.l.b16 %v55
    %v130 = vunpack.c.l.b16 %v56
    %v131 = vunpack.c.l.b16 %v57
    %v132 = vunpack.c.l.b16 %v58
    %v133 = vunpack.c.l.b16 %v59
    %v134 = vunpack.c.l.b16 %v60
    %v135 = vunpack.c.l.b16 %v61
    %v136 = vunpack.c.l.b16 %v62
    %v137 = vpack.c.b16 %v106, %v105
    %v138 = vpack.c.b16 %v108, %v107
    %v139 = vpack.c.b16 %v110, %v109
    %v140 = vpack.c.b16 %v112, %v111
    %v141 = vpack.c.b16 %v114, %v113
    %v142 = vpack.c.b16 %v116, %v115
    %v143 = vpack.c.b16 %v118, %v117
    %v144 = vpack.c.b16 %v120, %v119
    %v145 = vpack.c.b16 %v122, %v121
    %v146 = vpack.c.b16 %v124, %v123
    %v147 = vpack.c.b16 %v126, %v125
    %v148 = vpack.c.b16 %v128, %v127
    %v149 = vpack.c.b16 %v130, %v129
    %v150 = vpack.c.b16 %v132, %v131
    %v151 = vpack.c.b16 %v134, %v133
    %v152 = vpack.c.b16 %v136, %v135
    %169 = vmatprep.subr.bf16.mxu0 0
    %170 = vmatpush1.bf16.msra.mxu0 %v144
    %171 = vmatprep.subr.bf16.mxu0 0
    %172 = vmatpush1.bf16.msra.mxu0 %v143
    %173 = vmatprep.subr.bf16.mxu0 0
    %174 = vmatpush1.bf16.msra.mxu0 %v142
    %175 = vmatprep.subr.bf16.mxu0 0
    %176 = vmatpush1.bf16.msra.mxu0 %v141
    %177 = vmatprep.subr.bf16.mxu0 0
    %178 = vmatpush1.bf16.msra.mxu0 %v140
    %179 = vmatprep.subr.bf16.mxu0 0
    %180 = vmatpush1.bf16.msra.mxu0 %v139
    %181 = vmatprep.subr.bf16.mxu0 0
    %182 = vmatpush1.bf16.msra.mxu0 %v138
    %183 = vmatprep.subr.bf16.mxu0 0
    %184 = vmatpush1.bf16.msra.mxu0 %v137
    %185 = vmatprep.subr.bf16.mxu0 0
    %186 = vmatpush2.bf16.msra.mxu0 %v152
    %187 = vmatprep.subr.bf16.mxu0 0
    %188 = vmatpush2.bf16.msra.mxu0 %v151
    %189 = vmatprep.subr.bf16.mxu0 0
    %190 = vmatpush2.bf16.msra.mxu0 %v150
    %191 = vmatprep.subr.bf16.mxu0 0
    %192 = vmatpush2.bf16.msra.mxu0 %v149
    %193 = vmatprep.subr.bf16.mxu0 0
    %194 = vmatpush2.bf16.msra.mxu0 %v148
    %195 = vmatprep.subr.bf16.mxu0 0
    %196 = vmatpush2.bf16.msra.mxu0 %v147
    %197 = vmatprep.subr.bf16.mxu0 0
    %198 = vmatpush2.bf16.msra.mxu0 %v146
    %199 = vmatprep.subr.bf16.mxu0 0
    %200 = vmatpush2.bf16.msra.mxu0 %v145
    %201 = vmatprep.mubr.bf16.mxu0 %v70
    %202 = vmatmul.mubr.bf16.gmra.mxu0 %v69
    %v203 = vpop.f32.mrf.mxu0
    %v204 = vadd.f32 0.0, %v203
    %v205 = vpop.f32.mrf.mxu0
    %v206 = vpop.f32.mrf.mxu0
    %v207 = vadd.f32 0.0, %v206
    %v208 = vpop.f32.mrf.mxu0
    %209 = vdwg.mxu0
    %v210 = vld [vmem:[%s2] ss:$0 sm:$0xff]
    %v211 = vld [vmem:[%s2 + $0x1] ss:$0 sm:$0xff]
    %v212 = vmul.f32 %v204, %v210
    %v213 = vmul.f32 %v207, %v210
    %v214 = vadd.f32 %v212, %v211
    %v215 = vadd.f32 %v213, %v211
    %v216 = vmax.f32 %v214, -1.0
    %v217 = vmax.f32 %v215, -1.0
    %v218 = vmin.f32 %v216, 1.0
    %v219 = vmin.f32 %v217, 1.0
    %v220 = vpack.c.bf16 %v219, %v218
    %v221 = vld [vmem:[#allocation2] sm:$0xff]
    %v222 = vld [vmem:[#allocation2 + $0x8] sm:$0xff]
    %v223 = vld [vmem:[#allocation2 + $0x14] sm:$0xff]
    %v224 = vld [vmem:[#allocation2 + $0x1c] sm:$0xff]
    %v225 = vld [vmem:[#allocation2 + $0x28] sm:$0xff]
    %v226 = vld [vmem:[#allocation2 + $0x30] sm:$0xff]
    %v227 = vld [vmem:[#allocation2 + $0x3c] sm:$0xff]
    %v228 = vld [vmem:[#allocation2 + $0x44] sm:$0xff]
    %v229 = vld [vmem:[#allocation2 + $0x50] sm:$0xff]
    %v230 = vld [vmem:[#allocation2 + $0x58] sm:$0xff]
    %v231 = vld [vmem:[#allocation2 + $0x64] sm:$0xff]
    %v232 = vld [vmem:[#allocation2 + $0x6c] sm:$0xff]
    %v233 = vld [vmem:[#allocation2 + $0x78] sm:$0xff]
    %v234 = vld [vmem:[#allocation2 + $0x80] sm:$0xff]
    %v235 = vld [vmem:[#allocation2 + $0x8c] sm:$0xff]
    %v236 = vld [vmem:[#allocation2 + $0x94] sm:$0xff]
    %v237 = vld [vmem:[#allocation2 + $0xa0] sm:$0xff]
    %v238 = vld [vmem:[#allocation2 + $0xa8] sm:$0xff]
    %v239 = vld [vmem:[#allocation2 + $0xb4] sm:$0xff]
    %v240 = vld [vmem:[#allocation2 + $0xbc] sm:$0xff]
    %v241 = vld [vmem:[#allocation2 + $0xc8] sm:$0xff]
    %v242 = vld [vmem:[#allocation2 + $0xd0] sm:$0xff]
    %v243 = vld [vmem:[#allocation2 + $0xdc] sm:$0xff]
    %v244 = vld [vmem:[#allocation2 + $0xe4] sm:$0xff]
    %v245 = vld [vmem:[#allocation2 + $0xf0] sm:$0xff]
    %v246 = vld [vmem:[#allocation2 + $0xf8] sm:$0xff]
    %v247 = vld [vmem:[#allocation2 + $0x104] sm:$0xff]
    %v248 = vld [vmem:[#allocation2 + $0x10c] sm:$0xff]
    %v249 = vld [vmem:[#allocation2 + $0x118] sm:$0xff]
    %v250 = vld [vmem:[#allocation2 + $0x120] sm:$0xff]
    %v251 = vld [vmem:[#allocation2 + $0x12c] sm:$0xff]
    %v252 = vld [vmem:[#allocation2 + $0x134] sm:$0xff]
    %v285 = vunpack.c.l.b16 %v221
    %v286 = vunpack.c.h.b16 %v221
    %v287 = vunpack.c.l.b16 %v222
    %v288 = vunpack.c.h.b16 %v222
    %v289 = vunpack.c.l.b16 %v223
    %v290 = vunpack.c.h.b16 %v223
    %v291 = vunpack.c.l.b16 %v224
    %v292 = vunpack.c.h.b16 %v224
    %v293 = vunpack.c.l.b16 %v225
    %v294 = vunpack.c.h.b16 %v225
    %v295 = vunpack.c.l.b16 %v226
    %v296 = vunpack.c.h.b16 %v226
    %v297 = vunpack.c.l.b16 %v227
    %v298 = vunpack.c.h.b16 %v227
    %v299 = vunpack.c.l.b16 %v228
    %v300 = vunpack.c.h.b16 %v228
    %v301 = vunpack.c.l.b16 %v229
    %v302 = vunpack.c.h.b16 %v229
    %v303 = vunpack.c.l.b16 %v230
    %v304 = vunpack.c.h.b16 %v230
    %v305 = vunpack.c.l.b16 %v231
    %v306 = vunpack.c.h.b16 %v231
    %v307 = vunpack.c.l.b16 %v232
    %v308 = vunpack.c.h.b16 %v232
    %v309 = vunpack.c.l.b16 %v233
    %v310 = vunpack.c.h.b16 %v233
    %v311 = vunpack.c.l.b16 %v234
    %v312 = vunpack.c.h.b16 %v234
    %v313 = vunpack.c.l.b16 %v235
    %v314 = vunpack.c.h.b16 %v235
    %v315 = vunpack.c.l.b16 %v236
    %v316 = vunpack.c.h.b16 %v236
    %v317 = vunpack.c.l.b16 %v237
    %v318 = vunpack.c.h.b16 %v237
    %v319 = vunpack.c.l.b16 %v238
    %v320 = vunpack.c.h.b16 %v238
    %v321 = vunpack.c.l.b16 %v239
    %v322 = vunpack.c.h.b16 %v239
    %v323 = vunpack.c.l.b16 %v240
    %v324 = vunpack.c.h.b16 %v240
    %v325 = vunpack.c.l.b16 %v241
    %v326 = vunpack.c.h.b16 %v241
    %v327 = vunpack.c.l.b16 %v242
    %v328 = vunpack.c.h.b16 %v242
    %v329 = vunpack.c.l.b16 %v243
    %v330 = vunpack.c.h.b16 %v243
    %v331 = vunpack.c.l.b16 %v244
    %v332 = vunpack.c.h.b16 %v244
    %v333 = vunpack.c.l.b16 %v245
    %v334 = vunpack.c.h.b16 %v245
    %v335 = vunpack.c.l.b16 %v246
    %v336 = vunpack.c.h.b16 %v246
    %v337 = vunpack.c.l.b16 %v247
    %v338 = vunpack.c.h.b16 %v247
    %v339 = vunpack.c.l.b16 %v248
    %v340 = vunpack.c.h.b16 %v248
    %v341 = vunpack.c.l.b16 %v249
    %v342 = vunpack.c.h.b16 %v249
    %v343 = vunpack.c.l.b16 %v250
    %v344 = vunpack.c.h.b16 %v250
    %v345 = vunpack.c.l.b16 %v251
    %v346 = vunpack.c.h.b16 %v251
    %v347 = vunpack.c.l.b16 %v252
    %v348 = vunpack.c.h.b16 %v252
    %v349 = vpack.c.b16 %v289, %v285
    %v350 = vpack.c.b16 %v290, %v286
    %v351 = vpack.c.b16 %v291, %v287
    %v352 = vpack.c.b16 %v292, %v288
    %v353 = vpack.c.b16 %v297, %v293
    %v354 = vpack.c.b16 %v298, %v294
    %v355 = vpack.c.b16 %v299, %v295
    %v356 = vpack.c.b16 %v300, %v296
    %v357 = vpack.c.b16 %v305, %v301
    %v358 = vpack.c.b16 %v306, %v302
    %v359 = vpack.c.b16 %v307, %v303
    %v360 = vpack.c.b16 %v308, %v304
    %v361 = vpack.c.b16 %v313, %v309
    %v362 = vpack.c.b16 %v314, %v310
    %v363 = vpack.c.b16 %v315, %v311
    %v364 = vpack.c.b16 %v316, %v312
    %v365 = vpack.c.b16 %v321, %v317
    %v366 = vpack.c.b16 %v322, %v318
    %v367 = vpack.c.b16 %v323, %v319
    %v368 = vpack.c.b16 %v324, %v320
    %v369 = vpack.c.b16 %v329, %v325
    %v370 = vpack.c.b16 %v330, %v326
    %v371 = vpack.c.b16 %v331, %v327
    %v372 = vpack.c.b16 %v332, %v328
    %v373 = vpack.c.b16 %v337, %v333
    %v374 = vpack.c.b16 %v338, %v334
    %v375 = vpack.c.b16 %v339, %v335
    %v376 = vpack.c.b16 %v340, %v336
    %v377 = vpack.c.b16 %v345, %v341
    %v378 = vpack.c.b16 %v346, %v342
    %v379 = vpack.c.b16 %v347, %v343
    %v380 = vpack.c.b16 %v348, %v344
    %413 = vmatprep.subr.bf16.mxu0 %v378
    %414 = vmatpush1.bf16.msra.mxu0 %v377
    %415 = vmatprep.subr.bf16.mxu0 %v374
    %416 = vmatpush1.bf16.msra.mxu0 %v373
    %417 = vmatprep.subr.bf16.mxu0 %v370
    %418 = vmatpush1.bf16.msra.mxu0 %v369
    %419 = vmatprep.subr.bf16.mxu0 %v366
    %420 = vmatpush1.bf16.msra.mxu0 %v365
    %421 = vmatprep.subr.bf16.mxu0 %v362
    %422 = vmatpush1.bf16.msra.mxu0 %v361
    %423 = vmatprep.subr.bf16.mxu0 %v358
    %424 = vmatpush1.bf16.msra.mxu0 %v357
    %425 = vmatprep.subr.bf16.mxu0 %v354
    %426 = vmatpush1.bf16.msra.mxu0 %v353
    %427 = vmatprep.subr.bf16.mxu0 %v350
    %428 = vmatpush1.bf16.msra.mxu0 %v349
    %429 = vmatprep.subr.bf16.mxu0 0
    %430 = vmatpush2.bf16.msra.mxu0 0
    %431 = vmatprep.subr.bf16.mxu0 0
    %432 = vmatpush2.bf16.msra.mxu0 0
    %433 = vmatprep.subr.bf16.mxu0 0
    %434 = vmatpush2.bf16.msra.mxu0 0
    %435 = vmatprep.subr.bf16.mxu0 0
    %436 = vmatpush2.bf16.msra.mxu0 0
    %437 = vmatprep.subr.bf16.mxu0 0
    %438 = vmatpush2.bf16.msra.mxu0 0
    %439 = vmatprep.subr.bf16.mxu0 0
    %440 = vmatpush2.bf16.msra.mxu0 0
    %441 = vmatprep.subr.bf16.mxu0 0
    %442 = vmatpush2.bf16.msra.mxu0 0
    %443 = vmatprep.subr.bf16.mxu0 0
    %444 = vmatpush2.bf16.msra.mxu0 0
    %445 = vmatprep.mubr.bf16.mxu0 0
    %446 = vmatmul.mubr.bf16.gmra.mxu0 %v220
    %v447 = vpop.f32.mrf.mxu0
    %v448 = vadd.f32 0.0, %v447
    %v449 = vpop.f32.mrf.mxu0
    %v450 = vadd.f32 0.0, %v449
    %v451 = vpop.f32.mrf.mxu0
    %v452 = vadd.f32 0.0, %v451
    %v453 = vpop.f32.mrf.mxu0
    %v454 = vadd.f32 0.0, %v453
    %455 = vdwg.mxu0
    %456 = vmatprep.subr.bf16.mxu0 %v380
    %457 = vmatpush1.bf16.msra.mxu0 %v379
    %458 = vmatprep.subr.bf16.mxu0 %v376
    %459 = vmatpush1.bf16.msra.mxu0 %v375
    %460 = vmatprep.subr.bf16.mxu0 %v372
    %461 = vmatpush1.bf16.msra.mxu0 %v371
    %462 = vmatprep.subr.bf16.mxu0 %v368
    %463 = vmatpush1.bf16.msra.mxu0 %v367
    %464 = vmatprep.subr.bf16.mxu0 %v364
    %465 = vmatpush1.bf16.msra.mxu0 %v363
    %466 = vmatprep.subr.bf16.mxu0 %v360
    %467 = vmatpush1.bf16.msra.mxu0 %v359
    %468 = vmatprep.subr.bf16.mxu0 %v356
    %469 = vmatpush1.bf16.msra.mxu0 %v355
    %470 = vmatprep.subr.bf16.mxu0 %v352
    %471 = vmatpush1.bf16.msra.mxu0 %v351
    %472 = vmatprep.subr.bf16.mxu0 0
    %473 = vmatpush2.bf16.msra.mxu0 0
    %474 = vmatprep.subr.bf16.mxu0 0
    %475 = vmatpush2.bf16.msra.mxu0 0
    %476 = vmatprep.subr.bf16.mxu0 0
    %477 = vmatpush2.bf16.msra.mxu0 0
    %478 = vmatprep.subr.bf16.mxu0 0
    %479 = vmatpush2.bf16.msra.mxu0 0
    %480 = vmatprep.subr.bf16.mxu0 0
    %481 = vmatpush2.bf16.msra.mxu0 0
    %482 = vmatprep.subr.bf16.mxu0 0
    %483 = vmatpush2.bf16.msra.mxu0 0
    %484 = vmatprep.subr.bf16.mxu0 0
    %485 = vmatpush2.bf16.msra.mxu0 0
    %486 = vmatprep.subr.bf16.mxu0 0
    %487 = vmatpush2.bf16.msra.mxu0 0
    %488 = vmatprep.mubr.bf16.mxu0 0
    %489 = vmatmul.mubr.bf16.gmra.mxu0 %v220
    %v490 = vpop.f32.mrf.mxu0
    %v491 = vadd.f32 0.0, %v490
    %v492 = vpop.f32.mrf.mxu0
    %v493 = vadd.f32 0.0, %v492
    %v494 = vpop.f32.mrf.mxu0
    %v495 = vadd.f32 0.0, %v494
    %v496 = vpop.f32.mrf.mxu0
    %v497 = vadd.f32 0.0, %v496
    %498 = vdwg.mxu0
    %s499 = scalar_lea.vmem %s2, 2
    %v500 = vld [vmem:[%s499] ss:$8 sm:$0xf]
    %s501 = scalar_lea.vmem %s2, 3
    %v502 = vld [vmem:[%s501] ss:$8 sm:$0xf]
    %v504 = vlaneseq
    %v505 = vshrl.u32 %v504, 7
    %v506 = vsub.s32 0, %v505
    %v507 = vrot.slane %v500, %v506
    %v508 = vlaneseq
    %v509 = vshrl.u32 %v508, 7
    %v510 = vsub.s32 1, %v509
    %v511 = vrot.slane %v500, %v510
    %v512 = vlaneseq
    %v513 = vshrl.u32 %v512, 7
    %v514 = vsub.s32 2, %v513
    %v515 = vrot.slane %v500, %v514
    %v516 = vlaneseq
    %v517 = vshrl.u32 %v516, 7
    %v518 = vsub.s32 3, %v517
    %v519 = vrot.slane %v500, %v518
    %v524 = vmul.f32 %v448, %v507
    %v525 = vmul.f32 %v450, %v511
    %v526 = vmul.f32 %v491, %v515
    %v527 = vmul.f32 %v493, %v519
    %v528 = vmul.f32 %v452, %v507
    %v529 = vmul.f32 %v454, %v511
    %v530 = vmul.f32 %v495, %v515
    %v531 = vmul.f32 %v497, %v519
    %v533 = vlaneseq
    %v534 = vshrl.u32 %v533, 7
    %v535 = vsub.s32 0, %v534
    %v536 = vrot.slane %v502, %v535
    %v537 = vlaneseq
    %v538 = vshrl.u32 %v537, 7
    %v539 = vsub.s32 1, %v538
    %v540 = vrot.slane %v502, %v539
    %v541 = vlaneseq
    %v542 = vshrl.u32 %v541, 7
    %v543 = vsub.s32 2, %v542
    %v544 = vrot.slane %v502, %v543
    %v545 = vlaneseq
    %v546 = vshrl.u32 %v545, 7
    %v547 = vsub.s32 3, %v546
    %v548 = vrot.slane %v502, %v547
    %v553 = vadd.f32 %v524, %v536
    %v554 = vadd.f32 %v525, %v540
    %v555 = vadd.f32 %v526, %v544
    %v556 = vadd.f32 %v527, %v548
    %v557 = vadd.f32 %v528, %v536
    %v558 = vadd.f32 %v529, %v540
    %v559 = vadd.f32 %v530, %v544
    %v560 = vadd.f32 %v531, %v548
    %v561 = vmax.f32 %v553, -1.0
    %v562 = vmax.f32 %v554, -1.0
    %v563 = vmax.f32 %v555, -1.0
    %v564 = vmax.f32 %v556, -1.0
    %v565 = vmax.f32 %v557, -1.0
    %v566 = vmax.f32 %v558, -1.0
    %v567 = vmax.f32 %v559, -1.0
    %v568 = vmax.f32 %v560, -1.0
    %v569 = vmin.f32 %v561, 1.0
    %v570 = vmin.f32 %v562, 1.0
    %v571 = vmin.f32 %v563, 1.0
    %v572 = vmin.f32 %v564, 1.0
    %v573 = vmin.f32 %v565, 1.0
    %v574 = vmin.f32 %v566, 1.0
    %v575 = vmin.f32 %v567, 1.0
    %v576 = vmin.f32 %v568, 1.0
    %v577 = vpack.c.bf16 %v573, %v569
    %v578 = vpack.c.bf16 %v574, %v570
    %v579 = vpack.c.bf16 %v575, %v571
    %v580 = vpack.c.bf16 %v576, %v572
    %v581 = vld [vmem:[#allocation2 + $0x140] sm:$0xff]
    %v582 = vld [vmem:[#allocation2 + $0x148] sm:$0xf]
    %v583 = vld [vmem:[#allocation2 + $0x154] sm:$0xff]
    %v584 = vld [vmem:[#allocation2 + $0x15c] sm:$0xf]
    %v585 = vld [vmem:[#allocation2 + $0x168] sm:$0xff]
    %v586 = vld [vmem:[#allocation2 + $0x170] sm:$0xf]
    %v587 = vld [vmem:[#allocation2 + $0x17c] sm:$0xff]
    %v588 = vld [vmem:[#allocation2 + $0x184] sm:$0xf]
    %v589 = vld [vmem:[#allocation2 + $0x190] sm:$0xff]
    %v590 = vld [vmem:[#allocation2 + $0x198] sm:$0xf]
    %v591 = vld [vmem:[#allocation2 + $0x1a4] sm:$0xff]
    %v592 = vld [vmem:[#allocation2 + $0x1ac] sm:$0xf]
    %v593 = vld [vmem:[#allocation2 + $0x1b8] sm:$0xff]
    %v594 = vld [vmem:[#allocation2 + $0x1c0] sm:$0xf]
    %v595 = vld [vmem:[#allocation2 + $0x1cc] sm:$0xff]
    %v596 = vld [vmem:[#allocation2 + $0x1d4] sm:$0xf]
    %v597 = vld [vmem:[#allocation2 + $0x1e0] sm:$0xff]
    %v598 = vld [vmem:[#allocation2 + $0x1e8] sm:$0xf]
    %v599 = vld [vmem:[#allocation2 + $0x1f4] sm:$0xff]
    %v600 = vld [vmem:[#allocation2 + $0x1fc] sm:$0xf]
    %v601 = vld [vmem:[#allocation2 + $0x208] sm:$0xff]
    %v602 = vld [vmem:[#allocation2 + $0x210] sm:$0xf]
    %v603 = vld [vmem:[#allocation2 + $0x21c] sm:$0xff]
    %v604 = vld [vmem:[#allocation2 + $0x224] sm:$0xf]
    %v605 = vld [vmem:[#allocation2 + $0x230] sm:$0xff]
    %v606 = vld [vmem:[#allocation2 + $0x238] sm:$0xf]
    %v607 = vld [vmem:[#allocation2 + $0x244] sm:$0xff]
    %v608 = vld [vmem:[#allocation2 + $0x24c] sm:$0xf]
    %v609 = vld [vmem:[#allocation2 + $0x258] sm:$0xff]
    %v610 = vld [vmem:[#allocation2 + $0x260] sm:$0xf]
    %v611 = vld [vmem:[#allocation2 + $0x26c] sm:$0xff]
    %v612 = vld [vmem:[#allocation2 + $0x274] sm:$0xf]
    %v613 = vld [vmem:[#allocation2 + $0x280] sm:$0xff]
    %v614 = vld [vmem:[#allocation2 + $0x288] sm:$0xf]
    %v615 = vld [vmem:[#allocation2 + $0x294] sm:$0xff]
    %v616 = vld [vmem:[#allocation2 + $0x29c] sm:$0xf]
    %v617 = vld [vmem:[#allocation2 + $0x2a8] sm:$0xff]
    %v618 = vld [vmem:[#allocation2 + $0x2b0] sm:$0xf]
    %v619 = vld [vmem:[#allocation2 + $0x2bc] sm:$0xff]
    %v620 = vld [vmem:[#allocation2 + $0x2c4] sm:$0xf]
    %v621 = vld [vmem:[#allocation2 + $0x2d0] sm:$0xff]
    %v622 = vld [vmem:[#allocation2 + $0x2d8] sm:$0xf]
    %v623 = vld [vmem:[#allocation2 + $0x2e4] sm:$0xff]
    %v624 = vld [vmem:[#allocation2 + $0x2ec] sm:$0xf]
    %v625 = vld [vmem:[#allocation2 + $0x2f8] sm:$0xff]
    %v626 = vld [vmem:[#allocation2 + $0x300] sm:$0xf]
    %v627 = vld [vmem:[#allocation2 + $0x30c] sm:$0xff]
    %v628 = vld [vmem:[#allocation2 + $0x314] sm:$0xf]
    %v629 = vld [vmem:[#allocation2 + $0x320] sm:$0xff]
    %v630 = vld [vmem:[#allocation2 + $0x328] sm:$0xf]
    %v631 = vld [vmem:[#allocation2 + $0x334] sm:$0xff]
    %v632 = vld [vmem:[#allocation2 + $0x33c] sm:$0xf]
    %v633 = vld [vmem:[#allocation2 + $0x348] sm:$0xff]
    %v634 = vld [vmem:[#allocation2 + $0x350] sm:$0xf]
    %v635 = vld [vmem:[#allocation2 + $0x35c] sm:$0xff]
    %v636 = vld [vmem:[#allocation2 + $0x364] sm:$0xf]
    %v637 = vld [vmem:[#allocation2 + $0x370] sm:$0xff]
    %v638 = vld [vmem:[#allocation2 + $0x378] sm:$0xf]
    %v639 = vld [vmem:[#allocation2 + $0x384] sm:$0xff]
    %v640 = vld [vmem:[#allocation2 + $0x38c] sm:$0xf]
    %v641 = vld [vmem:[#allocation2 + $0x398] sm:$0xff]
    %v642 = vld [vmem:[#allocation2 + $0x3a0] sm:$0xf]
    %v643 = vld [vmem:[#allocation2 + $0x3ac] sm:$0xff]
    %v644 = vld [vmem:[#allocation2 + $0x3b4] sm:$0xf]
    %v645 = vld [vmem:[#allocation2 + $0x3c0] sm:$0xff]
    %v646 = vld [vmem:[#allocation2 + $0x3c8] sm:$0xf]
    %v647 = vld [vmem:[#allocation2 + $0x3d4] sm:$0xff]
    %v648 = vld [vmem:[#allocation2 + $0x3dc] sm:$0xf]
    %v649 = vld [vmem:[#allocation2 + $0x3e8] sm:$0xff]
    %v650 = vld [vmem:[#allocation2 + $0x3f0] sm:$0xf]
    %v651 = vld [vmem:[#allocation2 + $0x3fc] sm:$0xff]
    %v652 = vld [vmem:[#allocation2 + $0x404] sm:$0xf]
    %v653 = vld [vmem:[#allocation2 + $0x410] sm:$0xff]
    %v654 = vld [vmem:[#allocation2 + $0x418] sm:$0xf]
    %v655 = vld [vmem:[#allocation2 + $0x424] sm:$0xff]
    %v656 = vld [vmem:[#allocation2 + $0x42c] sm:$0xf]
    %v657 = vld [vmem:[#allocation2 + $0x438] sm:$0xff]
    %v658 = vld [vmem:[#allocation2 + $0x440] sm:$0xf]
    %v659 = vld [vmem:[#allocation2 + $0x44c] sm:$0xff]
    %v660 = vld [vmem:[#allocation2 + $0x454] sm:$0xf]
    %v661 = vld [vmem:[#allocation2 + $0x460] sm:$0xff]
    %v662 = vld [vmem:[#allocation2 + $0x468] sm:$0xf]
    %v663 = vld [vmem:[#allocation2 + $0x474] sm:$0xff]
    %v664 = vld [vmem:[#allocation2 + $0x47c] sm:$0xf]
    %v665 = vld [vmem:[#allocation2 + $0x488] sm:$0xff]
    %v666 = vld [vmem:[#allocation2 + $0x490] sm:$0xf]
    %v667 = vld [vmem:[#allocation2 + $0x49c] sm:$0xff]
    %v668 = vld [vmem:[#allocation2 + $0x4a4] sm:$0xf]
    %v669 = vld [vmem:[#allocation2 + $0x4b0] sm:$0xff]
    %v670 = vld [vmem:[#allocation2 + $0x4b8] sm:$0xf]
    %v671 = vld [vmem:[#allocation2 + $0x4c4] sm:$0xff]
    %v672 = vld [vmem:[#allocation2 + $0x4cc] sm:$0xf]
    %v673 = vld [vmem:[#allocation2 + $0x4d8] sm:$0xff]
    %v674 = vld [vmem:[#allocation2 + $0x4e0] sm:$0xf]
    %v675 = vld [vmem:[#allocation2 + $0x4ec] sm:$0xff]
    %v676 = vld [vmem:[#allocation2 + $0x4f4] sm:$0xf]
    %v677 = vld [vmem:[#allocation2 + $0x500] sm:$0xff]
    %v678 = vld [vmem:[#allocation2 + $0x508] sm:$0xf]
    %v679 = vld [vmem:[#allocation2 + $0x514] sm:$0xff]
    %v680 = vld [vmem:[#allocation2 + $0x51c] sm:$0xf]
    %v681 = vld [vmem:[#allocation2 + $0x528] sm:$0xff]
    %v682 = vld [vmem:[#allocation2 + $0x530] sm:$0xf]
    %v683 = vld [vmem:[#allocation2 + $0x53c] sm:$0xff]
    %v684 = vld [vmem:[#allocation2 + $0x544] sm:$0xf]
    %v685 = vld [vmem:[#allocation2 + $0x550] sm:$0xff]
    %v686 = vld [vmem:[#allocation2 + $0x558] sm:$0xf]
    %v687 = vld [vmem:[#allocation2 + $0x564] sm:$0xff]
    %v688 = vld [vmem:[#allocation2 + $0x56c] sm:$0xf]
    %v689 = vld [vmem:[#allocation2 + $0x578] sm:$0xff]
    %v690 = vld [vmem:[#allocation2 + $0x580] sm:$0xf]
    %v691 = vld [vmem:[#allocation2 + $0x58c] sm:$0xff]
    %v692 = vld [vmem:[#allocation2 + $0x594] sm:$0xf]
    %v693 = vld [vmem:[#allocation2 + $0x5a0] sm:$0xff]
    %v694 = vld [vmem:[#allocation2 + $0x5a8] sm:$0xf]
    %v695 = vld [vmem:[#allocation2 + $0x5b4] sm:$0xff]
    %v696 = vld [vmem:[#allocation2 + $0x5bc] sm:$0xf]
    %v697 = vld [vmem:[#allocation2 + $0x5c8] sm:$0xff]
    %v698 = vld [vmem:[#allocation2 + $0x5d0] sm:$0xf]
    %v699 = vld [vmem:[#allocation2 + $0x5dc] sm:$0xff]
    %v700 = vld [vmem:[#allocation2 + $0x5e4] sm:$0xf]
    %v701 = vld [vmem:[#allocation2 + $0x5f0] sm:$0xff]
    %v702 = vld [vmem:[#allocation2 + $0x5f8] sm:$0xf]
    %v703 = vld [vmem:[#allocation2 + $0x604] sm:$0xff]
    %v704 = vld [vmem:[#allocation2 + $0x60c] sm:$0xf]
    %v705 = vld [vmem:[#allocation2 + $0x618] sm:$0xff]
    %v706 = vld [vmem:[#allocation2 + $0x620] sm:$0xf]
    %v707 = vld [vmem:[#allocation2 + $0x62c] sm:$0xff]
    %v708 = vld [vmem:[#allocation2 + $0x634] sm:$0xf]
    %v837 = vunpack.c.l.b16 %v581
    %v838 = vunpack.c.h.b16 %v581
    %v839 = vunpack.c.l.b16 %v582
    %v840 = vunpack.c.l.b16 %v583
    %v841 = vunpack.c.h.b16 %v583
    %v842 = vunpack.c.l.b16 %v584
    %v843 = vunpack.c.l.b16 %v585
    %v844 = vunpack.c.h.b16 %v585
    %v845 = vunpack.c.l.b16 %v586
    %v846 = vunpack.c.l.b16 %v587
    %v847 = vunpack.c.h.b16 %v587
    %v848 = vunpack.c.l.b16 %v588
    %v849 = vunpack.c.l.b16 %v589
    %v850 = vunpack.c.h.b16 %v589
    %v851 = vunpack.c.l.b16 %v590
    %v852 = vunpack.c.l.b16 %v591
    %v853 = vunpack.c.h.b16 %v591
    %v854 = vunpack.c.l.b16 %v592
    %v855 = vunpack.c.l.b16 %v593
    %v856 = vunpack.c.h.b16 %v593
    %v857 = vunpack.c.l.b16 %v594
    %v858 = vunpack.c.l.b16 %v595
    %v859 = vunpack.c.h.b16 %v595
    %v860 = vunpack.c.l.b16 %v596
    %v861 = vunpack.c.l.b16 %v597
    %v862 = vunpack.c.h.b16 %v597
    %v863 = vunpack.c.l.b16 %v598
    %v864 = vunpack.c.l.b16 %v599
    %v865 = vunpack.c.h.b16 %v599
    %v866 = vunpack.c.l.b16 %v600
    %v867 = vunpack.c.l.b16 %v601
    %v868 = vunpack.c.h.b16 %v601
    %v869 = vunpack.c.l.b16 %v602
    %v870 = vunpack.c.l.b16 %v603
    %v871 = vunpack.c.h.b16 %v603
    %v872 = vunpack.c.l.b16 %v604
    %v873 = vunpack.c.l.b16 %v605
    %v874 = vunpack.c.h.b16 %v605
    %v875 = vunpack.c.l.b16 %v606
    %v876 = vunpack.c.l.b16 %v607
    %v877 = vunpack.c.h.b16 %v607
    %v878 = vunpack.c.l.b16 %v608
    %v879 = vunpack.c.l.b16 %v609
    %v880 = vunpack.c.h.b16 %v609
    %v881 = vunpack.c.l.b16 %v610
    %v882 = vunpack.c.l.b16 %v611
    %v883 = vunpack.c.h.b16 %v611
    %v884 = vunpack.c.l.b16 %v612
    %v885 = vunpack.c.l.b16 %v613
    %v886 = vunpack.c.h.b16 %v613
    %v887 = vunpack.c.l.b16 %v614
    %v888 = vunpack.c.l.b16 %v615
    %v889 = vunpack.c.h.b16 %v615
    %v890 = vunpack.c.l.b16 %v616
    %v891 = vunpack.c.l.b16 %v617
    %v892 = vunpack.c.h.b16 %v617
    %v893 = vunpack.c.l.b16 %v618
    %v894 = vunpack.c.l.b16 %v619
    %v895 = vunpack.c.h.b16 %v619
    %v896 = vunpack.c.l.b16 %v620
    %v897 = vunpack.c.l.b16 %v621
    %v898 = vunpack.c.h.b16 %v621
    %v899 = vunpack.c.l.b16 %v622
    %v900 = vunpack.c.l.b16 %v623
    %v901 = vunpack.c.h.b16 %v623
    %v902 = vunpack.c.l.b16 %v624
    %v903 = vunpack.c.l.b16 %v625
    %v904 = vunpack.c.h.b16 %v625
    %v905 = vunpack.c.l.b16 %v626
    %v906 = vunpack.c.l.b16 %v627
    %v907 = vunpack.c.h.b16 %v627
    %v908 = vunpack.c.l.b16 %v628
    %v909 = vunpack.c.l.b16 %v629
    %v910 = vunpack.c.h.b16 %v629
    %v911 = vunpack.c.l.b16 %v630
    %v912 = vunpack.c.l.b16 %v631
    %v913 = vunpack.c.h.b16 %v631
    %v914 = vunpack.c.l.b16 %v632
    %v915 = vunpack.c.l.b16 %v633
    %v916 = vunpack.c.h.b16 %v633
    %v917 = vunpack.c.l.b16 %v634
    %v918 = vunpack.c.l.b16 %v635
    %v919 = vunpack.c.h.b16 %v635
    %v920 = vunpack.c.l.b16 %v636
    %v921 = vunpack.c.l.b16 %v637
    %v922 = vunpack.c.h.b16 %v637
    %v923 = vunpack.c.l.b16 %v638
    %v924 = vunpack.c.l.b16 %v639
    %v925 = vunpack.c.h.b16 %v639
    %v926 = vunpack.c.l.b16 %v640
    %v927 = vunpack.c.l.b16 %v641
    %v928 = vunpack.c.h.b16 %v641
    %v929 = vunpack.c.l.b16 %v642
    %v930 = vunpack.c.l.b16 %v643
    %v931 = vunpack.c.h.b16 %v643
    %v932 = vunpack.c.l.b16 %v644
    %v933 = vunpack.c.l.b16 %v645
    %v934 = vunpack.c.h.b16 %v645
    %v935 = vunpack.c.l.b16 %v646
    %v936 = vunpack.c.l.b16 %v647
    %v937 = vunpack.c.h.b16 %v647
    %v938 = vunpack.c.l.b16 %v648
    %v939 = vunpack.c.l.b16 %v649
    %v940 = vunpack.c.h.b16 %v649
    %v941 = vunpack.c.l.b16 %v650
    %v942 = vunpack.c.l.b16 %v651
    %v943 = vunpack.c.h.b16 %v651
    %v944 = vunpack.c.l.b16 %v652
    %v945 = vunpack.c.l.b16 %v653
    %v946 = vunpack.c.h.b16 %v653
    %v947 = vunpack.c.l.b16 %v654
    %v948 = vunpack.c.l.b16 %v655
    %v949 = vunpack.c.h.b16 %v655
    %v950 = vunpack.c.l.b16 %v656
    %v951 = vunpack.c.l.b16 %v657
    %v952 = vunpack.c.h.b16 %v657
    %v953 = vunpack.c.l.b16 %v658
    %v954 = vunpack.c.l.b16 %v659
    %v955 = vunpack.c.h.b16 %v659
    %v956 = vunpack.c.l.b16 %v660
    %v957 = vunpack.c.l.b16 %v661
    %v958 = vunpack.c.h.b16 %v661
    %v959 = vunpack.c.l.b16 %v662
    %v960 = vunpack.c.l.b16 %v663
    %v961 = vunpack.c.h.b16 %v663
    %v962 = vunpack.c.l.b16 %v664
    %v963 = vunpack.c.l.b16 %v665
    %v964 = vunpack.c.h.b16 %v665
    %v965 = vunpack.c.l.b16 %v666
    %v966 = vunpack.c.l.b16 %v667
    %v967 = vunpack.c.h.b16 %v667
    %v968 = vunpack.c.l.b16 %v668
    %v969 = vunpack.c.l.b16 %v669
    %v970 = vunpack.c.h.b16 %v669
    %v971 = vunpack.c.l.b16 %v670
    %v972 = vunpack.c.l.b16 %v671
    %v973 = vunpack.c.h.b16 %v671
    %v974 = vunpack.c.l.b16 %v672
    %v975 = vunpack.c.l.b16 %v673
    %v976 = vunpack.c.h.b16 %v673
    %v977 = vunpack.c.l.b16 %v674
    %v978 = vunpack.c.l.b16 %v675
    %v979 = vunpack.c.h.b16 %v675
    %v980 = vunpack.c.l.b16 %v676
    %v981 = vunpack.c.l.b16 %v677
    %v982 = vunpack.c.h.b16 %v677
    %v983 = vunpack.c.l.b16 %v678
    %v984 = vunpack.c.l.b16 %v679
    %v985 = vunpack.c.h.b16 %v679
    %v986 = vunpack.c.l.b16 %v680
    %v987 = vunpack.c.l.b16 %v681
    %v988 = vunpack.c.h.b16 %v681
    %v989 = vunpack.c.l.b16 %v682
    %v990 = vunpack.c.l.b16 %v683
    %v991 = vunpack.c.h.b16 %v683
    %v992 = vunpack.c.l.b16 %v684
    %v993 = vunpack.c.l.b16 %v685
    %v994 = vunpack.c.h.b16 %v685
    %v995 = vunpack.c.l.b16 %v686
    %v996 = vunpack.c.l.b16 %v687
    %v997 = vunpack.c.h.b16 %v687
    %v998 = vunpack.c.l.b16 %v688
    %v999 = vunpack.c.l.b16 %v689
    %v1000 = vunpack.c.h.b16 %v689
    %v1001 = vunpack.c.l.b16 %v690
    %v1002 = vunpack.c.l.b16 %v691
    %v1003 = vunpack.c.h.b16 %v691
    %v1004 = vunpack.c.l.b16 %v692
    %v1005 = vunpack.c.l.b16 %v693
    %v1006 = vunpack.c.h.b16 %v693
    %v1007 = vunpack.c.l.b16 %v694
    %v1008 = vunpack.c.l.b16 %v695
    %v1009 = vunpack.c.h.b16 %v695
    %v1010 = vunpack.c.l.b16 %v696
    %v1011 = vunpack.c.l.b16 %v697
    %v1012 = vunpack.c.h.b16 %v697
    %v1013 = vunpack.c.l.b16 %v698
    %v1014 = vunpack.c.l.b16 %v699
    %v1015 = vunpack.c.h.b16 %v699
    %v1016 = vunpack.c.l.b16 %v700
    %v1017 = vunpack.c.l.b16 %v701
    %v1018 = vunpack.c.h.b16 %v701
    %v1019 = vunpack.c.l.b16 %v702
    %v1020 = vunpack.c.l.b16 %v703
    %v1021 = vunpack.c.h.b16 %v703
    %v1022 = vunpack.c.l.b16 %v704
    %v1023 = vunpack.c.l.b16 %v705
    %v1024 = vunpack.c.h.b16 %v705
    %v1025 = vunpack.c.l.b16 %v706
    %v1026 = vunpack.c.l.b16 %v707
    %v1027 = vunpack.c.h.b16 %v707
    %v1028 = vunpack.c.l.b16 %v708
    %v1029 = vpack.c.b16 %v840, %v837
    %v1030 = vpack.c.b16 %v841, %v838
    %v1031 = vpack.c.b16 %v842, %v839
    %v1032 = vpack.c.b16 %v846, %v843
    %v1033 = vpack.c.b16 %v847, %v844
    %v1034 = vpack.c.b16 %v848, %v845
    %v1035 = vpack.c.b16 %v852, %v849
    %v1036 = vpack.c.b16 %v853, %v850
    %v1037 = vpack.c.b16 %v854, %v851
    %v1038 = vpack.c.b16 %v858, %v855
    %v1039 = vpack.c.b16 %v859, %v856
    %v1040 = vpack.c.b16 %v860, %v857
    %v1041 = vpack.c.b16 %v864, %v861
    %v1042 = vpack.c.b16 %v865, %v862
    %v1043 = vpack.c.b16 %v866, %v863
    %v1044 = vpack.c.b16 %v870, %v867
    %v1045 = vpack.c.b16 %v871, %v868
    %v1046 = vpack.c.b16 %v872, %v869
    %v1047 = vpack.c.b16 %v876, %v873
    %v1048 = vpack.c.b16 %v877, %v874
    %v1049 = vpack.c.b16 %v878, %v875
    %v1050 = vpack.c.b16 %v882, %v879
    %v1051 = vpack.c.b16 %v883, %v880
    %v1052 = vpack.c.b16 %v884, %v881
    %v1053 = vpack.c.b16 %v888, %v885
    %v1054 = vpack.c.b16 %v889, %v886
    %v1055 = vpack.c.b16 %v890, %v887
    %v1056 = vpack.c.b16 %v894, %v891
    %v1057 = vpack.c.b16 %v895, %v892
    %v1058 = vpack.c.b16 %v896, %v893
    %v1059 = vpack.c.b16 %v900, %v897
    %v1060 = vpack.c.b16 %v901, %v898
    %v1061 = vpack.c.b16 %v902, %v899
    %v1062 = vpack.c.b16 %v906, %v903
    %v1063 = vpack.c.b16 %v907, %v904
    %v1064 = vpack.c.b16 %v908, %v905
    %v1065 = vpack.c.b16 %v912, %v909
    %v1066 = vpack.c.b16 %v913, %v910
    %v1067 = vpack.c.b16 %v914, %v911
    %v1068 = vpack.c.b16 %v918, %v915
    %v1069 = vpack.c.b16 %v919, %v916
    %v1070 = vpack.c.b16 %v920, %v917
    %v1071 = vpack.c.b16 %v924, %v921
    %v1072 = vpack.c.b16 %v925, %v922
    %v1073 = vpack.c.b16 %v926, %v923
    %v1074 = vpack.c.b16 %v930, %v927
    %v1075 = vpack.c.b16 %v931, %v928
    %v1076 = vpack.c.b16 %v932, %v929
    %v1077 = vpack.c.b16 %v936, %v933
    %v1078 = vpack.c.b16 %v937, %v934
    %v1079 = vpack.c.b16 %v938, %v935
    %v1080 = vpack.c.b16 %v942, %v939
    %v1081 = vpack.c.b16 %v943, %v940
    %v1082 = vpack.c.b16 %v944, %v941
    %v1083 = vpack.c.b16 %v948, %v945
    %v1084 = vpack.c.b16 %v949, %v946
    %v1085 = vpack.c.b16 %v950, %v947
    %v1086 = vpack.c.b16 %v954, %v951
    %v1087 = vpack.c.b16 %v955, %v952
    %v1088 = vpack.c.b16 %v956, %v953
    %v1089 = vpack.c.b16 %v960, %v957
    %v1090 = vpack.c.b16 %v961, %v958
    %v1091 = vpack.c.b16 %v962, %v959
    %v1092 = vpack.c.b16 %v966, %v963
    %v1093 = vpack.c.b16 %v967, %v964
    %v1094 = vpack.c.b16 %v968, %v965
    %v1095 = vpack.c.b16 %v972, %v969
    %v1096 = vpack.c.b16 %v973, %v970
    %v1097 = vpack.c.b16 %v974, %v971
    %v1098 = vpack.c.b16 %v978, %v975
    %v1099 = vpack.c.b16 %v979, %v976
    %v1100 = vpack.c.b16 %v980, %v977
    %v1101 = vpack.c.b16 %v984, %v981
    %v1102 = vpack.c.b16 %v985, %v982
    %v1103 = vpack.c.b16 %v986, %v983
    %v1104 = vpack.c.b16 %v990, %v987
    %v1105 = vpack.c.b16 %v991, %v988
    %v1106 = vpack.c.b16 %v992, %v989
    %v1107 = vpack.c.b16 %v996, %v993
    %v1108 = vpack.c.b16 %v997, %v994
    %v1109 = vpack.c.b16 %v998, %v995
    %v1110 = vpack.c.b16 %v1002, %v999
    %v1111 = vpack.c.b16 %v1003, %v1000
    %v1112 = vpack.c.b16 %v1004, %v1001
    %v1113 = vpack.c.b16 %v1008, %v1005
    %v1114 = vpack.c.b16 %v1009, %v1006
    %v1115 = vpack.c.b16 %v1010, %v1007
    %v1116 = vpack.c.b16 %v1014, %v1011
    %v1117 = vpack.c.b16 %v1015, %v1012
    %v1118 = vpack.c.b16 %v1016, %v1013
    %v1119 = vpack.c.b16 %v1020, %v1017
    %v1120 = vpack.c.b16 %v1021, %v1018
    %v1121 = vpack.c.b16 %v1022, %v1019
    %v1122 = vpack.c.b16 %v1026, %v1023
    %v1123 = vpack.c.b16 %v1027, %v1024
    %v1124 = vpack.c.b16 %v1028, %v1025
    %1221 = vmatprep.subr.bf16.mxu0 %v1051
    %1222 = vmatpush1.bf16.msra.mxu0 %v1050
    %1223 = vmatprep.subr.bf16.mxu0 %v1048
    %1224 = vmatpush1.bf16.msra.mxu0 %v1047
    %1225 = vmatprep.subr.bf16.mxu0 %v1045
    %1226 = vmatpush1.bf16.msra.mxu0 %v1044
    %1227 = vmatprep.subr.bf16.mxu0 %v1042
    %1228 = vmatpush1.bf16.msra.mxu0 %v1041
    %1229 = vmatprep.subr.bf16.mxu0 %v1039
    %1230 = vmatpush1.bf16.msra.mxu0 %v1038
    %1231 = vmatprep.subr.bf16.mxu0 %v1036
    %1232 = vmatpush1.bf16.msra.mxu0 %v1035
    %1233 = vmatprep.subr.bf16.mxu0 %v1033
    %1234 = vmatpush1.bf16.msra.mxu0 %v1032
    %1235 = vmatprep.subr.bf16.mxu0 %v1030
    %1236 = vmatpush1.bf16.msra.mxu0 %v1029
    %1237 = vmatprep.subr.bf16.mxu0 %v1075
    %1238 = vmatpush2.bf16.msra.mxu0 %v1074
    %1239 = vmatprep.subr.bf16.mxu0 %v1072
    %1240 = vmatpush2.bf16.msra.mxu0 %v1071
    %1241 = vmatprep.subr.bf16.mxu0 %v1069
    %1242 = vmatpush2.bf16.msra.mxu0 %v1068
    %1243 = vmatprep.subr.bf16.mxu0 %v1066
    %1244 = vmatpush2.bf16.msra.mxu0 %v1065
    %1245 = vmatprep.subr.bf16.mxu0 %v1063
    %1246 = vmatpush2.bf16.msra.mxu0 %v1062
    %1247 = vmatprep.subr.bf16.mxu0 %v1060
    %1248 = vmatpush2.bf16.msra.mxu0 %v1059
    %1249 = vmatprep.subr.bf16.mxu0 %v1057
    %1250 = vmatpush2.bf16.msra.mxu0 %v1056
    %1251 = vmatprep.subr.bf16.mxu0 %v1054
    %1252 = vmatpush2.bf16.msra.mxu0 %v1053
    %1253 = vmatprep.mubr.bf16.mxu0 %v578
    %1254 = vmatmul.mubr.bf16.gmra.mxu0 %v577
    %v1255 = vpop.f32.mrf.mxu0
    %v1256 = vadd.f32 0.0, %v1255
    %v1257 = vpop.f32.mrf.mxu0
    %v1258 = vadd.f32 0.0, %v1257
    %v1259 = vpop.f32.mrf.mxu0
    %v1260 = vadd.f32 0.0, %v1259
    %v1261 = vpop.f32.mrf.mxu0
    %v1262 = vadd.f32 0.0, %v1261
    %1263 = vdwg.mxu0
    %1264 = vmatprep.subr.bf16.mxu0 %v1099
    %1265 = vmatpush1.bf16.msra.mxu0 %v1098
    %1266 = vmatprep.subr.bf16.mxu0 %v1096
    %1267 = vmatpush1.bf16.msra.mxu0 %v1095
    %1268 = vmatprep.subr.bf16.mxu0 %v1093
    %1269 = vmatpush1.bf16.msra.mxu0 %v1092
    %1270 = vmatprep.subr.bf16.mxu0 %v1090
    %1271 = vmatpush1.bf16.msra.mxu0 %v1089
    %1272 = vmatprep.subr.bf16.mxu0 %v1087
    %1273 = vmatpush1.bf16.msra.mxu0 %v1086
    %1274 = vmatprep.subr.bf16.mxu0 %v1084
    %1275 = vmatpush1.bf16.msra.mxu0 %v1083
    %1276 = vmatprep.subr.bf16.mxu0 %v1081
    %1277 = vmatpush1.bf16.msra.mxu0 %v1080
    %1278 = vmatprep.subr.bf16.mxu0 %v1078
    %1279 = vmatpush1.bf16.msra.mxu0 %v1077
    %1280 = vmatprep.subr.bf16.mxu0 %v1123
    %1281 = vmatpush2.bf16.msra.mxu0 %v1122
    %1282 = vmatprep.subr.bf16.mxu0 %v1120
    %1283 = vmatpush2.bf16.msra.mxu0 %v1119
    %1284 = vmatprep.subr.bf16.mxu0 %v1117
    %1285 = vmatpush2.bf16.msra.mxu0 %v1116
    %1286 = vmatprep.subr.bf16.mxu0 %v1114
    %1287 = vmatpush2.bf16.msra.mxu0 %v1113
    %1288 = vmatprep.subr.bf16.mxu0 %v1111
    %1289 = vmatpush2.bf16.msra.mxu0 %v1110
    %1290 = vmatprep.subr.bf16.mxu0 %v1108
    %1291 = vmatpush2.bf16.msra.mxu0 %v1107
    %1292 = vmatprep.subr.bf16.mxu0 %v1105
    %1293 = vmatpush2.bf16.msra.mxu0 %v1104
    %1294 = vmatprep.subr.bf16.mxu0 %v1102
    %1295 = vmatpush2.bf16.msra.mxu0 %v1101
    %1296 = vmatprep.mubr.bf16.mxu0 %v580
    %1297 = vmatmul.mubr.bf16.gmra.mxu0 %v579
    %v1298 = vpop.f32.mrf.mxu0
    %v1299 = vadd.f32 %v1256, %v1298
    %v1300 = vpop.f32.mrf.mxu0
    %v1301 = vadd.f32 %v1258, %v1300
    %v1302 = vpop.f32.mrf.mxu0
    %v1303 = vadd.f32 %v1260, %v1302
    %v1304 = vpop.f32.mrf.mxu0
    %v1305 = vadd.f32 %v1262, %v1304
    %1306 = vdwg.mxu0
    %1307 = vmatprep.subr.bf16.mxu0 0
    %1308 = vmatpush1.bf16.msra.mxu0 %v1052
    %1309 = vmatprep.subr.bf16.mxu0 0
    %1310 = vmatpush1.bf16.msra.mxu0 %v1049
    %1311 = vmatprep.subr.bf16.mxu0 0
    %1312 = vmatpush1.bf16.msra.mxu0 %v1046
    %1313 = vmatprep.subr.bf16.mxu0 0
    %1314 = vmatpush1.bf16.msra.mxu0 %v1043
    %1315 = vmatprep.subr.bf16.mxu0 0
    %1316 = vmatpush1.bf16.msra.mxu0 %v1040
    %1317 = vmatprep.subr.bf16.mxu0 0
    %1318 = vmatpush1.bf16.msra.mxu0 %v1037
    %1319 = vmatprep.subr.bf16.mxu0 0
    %1320 = vmatpush1.bf16.msra.mxu0 %v1034
    %1321 = vmatprep.subr.bf16.mxu0 0
    %1322 = vmatpush1.bf16.msra.mxu0 %v1031
    %1323 = vmatprep.subr.bf16.mxu0 0
    %1324 = vmatpush2.bf16.msra.mxu0 %v1076
    %1325 = vmatprep.subr.bf16.mxu0 0
    %1326 = vmatpush2.bf16.msra.mxu0 %v1073
    %1327 = vmatprep.subr.bf16.mxu0 0
    %1328 = vmatpush2.bf16.msra.mxu0 %v1070
    %1329 = vmatprep.subr.bf16.mxu0 0
    %1330 = vmatpush2.bf16.msra.mxu0 %v1067
    %1331 = vmatprep.subr.bf16.mxu0 0
    %1332 = vmatpush2.bf16.msra.mxu0 %v1064
    %1333 = vmatprep.subr.bf16.mxu0 0
    %1334 = vmatpush2.bf16.msra.mxu0 %v1061
    %1335 = vmatprep.subr.bf16.mxu0 0
    %1336 = vmatpush2.bf16.msra.mxu0 %v1058
    %1337 = vmatprep.subr.bf16.mxu0 0
    %1338 = vmatpush2.bf16.msra.mxu0 %v1055
    %1339 = vmatprep.mubr.bf16.mxu0 %v578
    %1340 = vmatmul.mubr.bf16.gmra.mxu0 %v577
    %v1341 = vpop.f32.mrf.mxu0
    %v1342 = vadd.f32 0.0, %v1341
    %v1343 = vpop.f32.mrf.mxu0
    %v1344 = vpop.f32.mrf.mxu0
    %v1345 = vadd.f32 0.0, %v1344
    %v1346 = vpop.f32.mrf.mxu0
    %1347 = vdwg.mxu0
    %1348 = vmatprep.subr.bf16.mxu0 0
    %1349 = vmatpush1.bf16.msra.mxu0 %v1100
    %1350 = vmatprep.subr.bf16.mxu0 0
    %1351 = vmatpush1.bf16.msra.mxu0 %v1097
    %1352 = vmatprep.subr.bf16.mxu0 0
    %1353 = vmatpush1.bf16.msra.mxu0 %v1094
    %1354 = vmatprep.subr.bf16.mxu0 0
    %1355 = vmatpush1.bf16.msra.mxu0 %v1091
    %1356 = vmatprep.subr.bf16.mxu0 0
    %1357 = vmatpush1.bf16.msra.mxu0 %v1088
    %1358 = vmatprep.subr.bf16.mxu0 0
    %1359 = vmatpush1.bf16.msra.mxu0 %v1085
    %1360 = vmatprep.subr.bf16.mxu0 0
    %1361 = vmatpush1.bf16.msra.mxu0 %v1082
    %1362 = vmatprep.subr.bf16.mxu0 0
    %1363 = vmatpush1.bf16.msra.mxu0 %v1079
    %1364 = vmatprep.subr.bf16.mxu0 0
    %1365 = vmatpush2.bf16.msra.mxu0 %v1124
    %1366 = vmatprep.subr.bf16.mxu0 0
    %1367 = vmatpush2.bf16.msra.mxu0 %v1121
    %1368 = vmatprep.subr.bf16.mxu0 0
    %1369 = vmatpush2.bf16.msra.mxu0 %v1118
    %1370 = vmatprep.subr.bf16.mxu0 0
    %1371 = vmatpush2.bf16.msra.mxu0 %v1115
    %1372 = vmatprep.subr.bf16.mxu0 0
    %1373 = vmatpush2.bf16.msra.mxu0 %v1112
    %1374 = vmatprep.subr.bf16.mxu0 0
    %1375 = vmatpush2.bf16.msra.mxu0 %v1109
    %1376 = vmatprep.subr.bf16.mxu0 0
    %1377 = vmatpush2.bf16.msra.mxu0 %v1106
    %1378 = vmatprep.subr.bf16.mxu0 0
    %1379 = vmatpush2.bf16.msra.mxu0 %v1103
    %1380 = vmatprep.mubr.bf16.mxu0 %v580
    %1381 = vmatmul.mubr.bf16.gmra.mxu0 %v579
    %v1382 = vpop.f32.mrf.mxu0
    %v1383 = vadd.f32 %v1342, %v1382
    %v1384 = vpop.f32.mrf.mxu0
    %v1385 = vpop.f32.mrf.mxu0
    %v1386 = vadd.f32 %v1345, %v1385
    %v1387 = vpop.f32.mrf.mxu0
    %1388 = vdwg.mxu0
    %s1389 = scalar_lea.vmem %s2, 4
    %v1390 = vld [vmem:[%s1389] ss:$8 sm:$0x7]
    %s1391 = scalar_lea.vmem %s2, 5
    %v1392 = vld [vmem:[%s1391] ss:$8 sm:$0x7]
    %v1394 = vlaneseq
    %v1395 = vshrl.u32 %v1394, 7
    %v1396 = vsub.s32 0, %v1395
    %v1397 = vrot.slane %v1390, %v1396
    %v1398 = vlaneseq
    %v1399 = vshrl.u32 %v1398, 7
    %v1400 = vsub.s32 1, %v1399
    %v1401 = vrot.slane %v1390, %v1400
    %v1402 = vlaneseq
    %v1403 = vshrl.u32 %v1402, 7
    %v1404 = vsub.s32 2, %v1403
    %v1405 = vrot.slane %v1390, %v1404
    %v1409 = vmul.f32 %v1299, %v1397
    %v1410 = vmul.f32 %v1301, %v1401
    %v1411 = vmul.f32 %v1383, %v1405
    %v1412 = vmul.f32 %v1303, %v1397
    %v1413 = vmul.f32 %v1305, %v1401
    %v1414 = vmul.f32 %v1386, %v1405
    %v1416 = vlaneseq
    %v1417 = vshrl.u32 %v1416, 7
    %v1418 = vsub.s32 0, %v1417
    %v1419 = vrot.slane %v1392, %v1418
    %v1420 = vlaneseq
    %v1421 = vshrl.u32 %v1420, 7
    %v1422 = vsub.s32 1, %v1421
    %v1423 = vrot.slane %v1392, %v1422
    %v1424 = vlaneseq
    %v1425 = vshrl.u32 %v1424, 7
    %v1426 = vsub.s32 2, %v1425
    %v1427 = vrot.slane %v1392, %v1426
    %v1431 = vadd.f32 %v1409, %v1419
    %v1432 = vadd.f32 %v1410, %v1423
    %v1433 = vadd.f32 %v1411, %v1427
    %v1434 = vadd.f32 %v1412, %v1419
    %v1435 = vadd.f32 %v1413, %v1423
    %v1436 = vadd.f32 %v1414, %v1427
    %v1437 = vmax.f32 %v1431, -1.0
    %v1438 = vmax.f32 %v1432, -1.0
    %v1439 = vmax.f32 %v1433, -1.0
    %v1440 = vmax.f32 %v1434, -1.0
    %v1441 = vmax.f32 %v1435, -1.0
    %v1442 = vmax.f32 %v1436, -1.0
    %v1443 = vmin.f32 %v1437, 1.0
    %v1444 = vmin.f32 %v1438, 1.0
    %v1445 = vmin.f32 %v1439, 1.0
    %v1446 = vmin.f32 %v1440, 1.0
    %v1447 = vmin.f32 %v1441, 1.0
    %v1448 = vmin.f32 %v1442, 1.0
    %v1449 = vpack.c.bf16 %v1446, %v1443
    %v1450 = vpack.c.bf16 %v1447, %v1444
    %v1451 = vpack.c.bf16 %v1448, %v1445
    %v1452 = vld [vmem:[#allocation2 + $0x290] sm:$0xf]
    %v1453 = vld [vmem:[#allocation2 + $0x2a4] sm:$0xf]
    %v1454 = vld [vmem:[#allocation2 + $0x2b8] sm:$0xf]
    %v1455 = vld [vmem:[#allocation2 + $0x2cc] sm:$0xf]
    %v1456 = vld [vmem:[#allocation2 + $0x2e0] sm:$0xf]
    %v1457 = vld [vmem:[#allocation2 + $0x2f4] sm:$0xf]
    %v1458 = vld [vmem:[#allocation2 + $0x308] sm:$0xf]
    %v1459 = vld [vmem:[#allocation2 + $0x31c] sm:$0xf]
    %v1460 = vld [vmem:[#allocation2 + $0x330] sm:$0xf]
    %v1461 = vld [vmem:[#allocation2 + $0x344] sm:$0xf]
    %v1462 = vld [vmem:[#allocation2 + $0x358] sm:$0xf]
    %v1463 = vld [vmem:[#allocation2 + $0x36c] sm:$0xf]
    %v1464 = vld [vmem:[#allocation2 + $0x380] sm:$0xf]
    %v1465 = vld [vmem:[#allocation2 + $0x394] sm:$0xf]
    %v1466 = vld [vmem:[#allocation2 + $0x3a8] sm:$0xf]
    %v1467 = vld [vmem:[#allocation2 + $0x3bc] sm:$0xf]
    %v1468 = vld [vmem:[#allocation2 + $0x3d0] sm:$0xf]
    %v1469 = vld [vmem:[#allocation2 + $0x3e4] sm:$0xf]
    %v1470 = vld [vmem:[#allocation2 + $0x3f8] sm:$0xf]
    %v1471 = vld [vmem:[#allocation2 + $0x40c] sm:$0xf]
    %v1472 = vld [vmem:[#allocation2 + $0x420] sm:$0xf]
    %v1473 = vld [vmem:[#allocation2 + $0x434] sm:$0xf]
    %v1474 = vld [vmem:[#allocation2 + $0x448] sm:$0xf]
    %v1475 = vld [vmem:[#allocation2 + $0x45c] sm:$0xf]
    %v1476 = vld [vmem:[#allocation2 + $0x470] sm:$0xf]
    %v1477 = vld [vmem:[#allocation2 + $0x484] sm:$0xf]
    %v1478 = vld [vmem:[#allocation2 + $0x498] sm:$0xf]
    %v1479 = vld [vmem:[#allocation2 + $0x4ac] sm:$0xf]
    %v1480 = vld [vmem:[#allocation2 + $0x4c0] sm:$0xf]
    %v1481 = vld [vmem:[#allocation2 + $0x4d4] sm:$0xf]
    %v1482 = vld [vmem:[#allocation2 + $0x4e8] sm:$0xf]
    %v1483 = vld [vmem:[#allocation2 + $0x4fc] sm:$0xf]
    %v1484 = vld [vmem:[#allocation2 + $0x510] sm:$0xf]
    %v1485 = vld [vmem:[#allocation2 + $0x524] sm:$0xf]
    %v1486 = vld [vmem:[#allocation2 + $0x538] sm:$0xf]
    %v1487 = vld [vmem:[#allocation2 + $0x54c] sm:$0xf]
    %v1488 = vld [vmem:[#allocation2 + $0x560] sm:$0xf]
    %v1489 = vld [vmem:[#allocation2 + $0x574] sm:$0xf]
    %v1490 = vld [vmem:[#allocation2 + $0x588] sm:$0xf]
    %v1491 = vld [vmem:[#allocation2 + $0x59c] sm:$0xf]
    %v1492 = vld [vmem:[#allocation2 + $0x5b0] sm:$0xf]
    %v1493 = vld [vmem:[#allocation2 + $0x5c4] sm:$0xf]
    %v1494 = vld [vmem:[#allocation2 + $0x5d8] sm:$0xf]
    %v1495 = vld [vmem:[#allocation2 + $0x5ec] sm:$0xf]
    %v1496 = vld [vmem:[#allocation2 + $0x600] sm:$0xf]
    %v1497 = vld [vmem:[#allocation2 + $0x614] sm:$0xf]
    %v1498 = vld [vmem:[#allocation2 + $0x628] sm:$0xf]
    %v1499 = vld [vmem:[#allocation2 + $0x63c] sm:$0xf]
    %v1500 = vld [vmem:[%s2 + $0x6] ss:$0 sm:$0xff]
    %v1549 = vunpack.c.l.b16 %v1452
    %v1550 = vunpack.c.l.b16 %v1453
    %v1551 = vunpack.c.l.b16 %v1454
    %v1552 = vunpack.c.l.b16 %v1455
    %v1553 = vunpack.c.l.b16 %v1456
    %v1554 = vunpack.c.l.b16 %v1457
    %v1555 = vunpack.c.l.b16 %v1458
    %v1556 = vunpack.c.l.b16 %v1459
    %v1557 = vunpack.c.l.b16 %v1460
    %v1558 = vunpack.c.l.b16 %v1461
    %v1559 = vunpack.c.l.b16 %v1462
    %v1560 = vunpack.c.l.b16 %v1463
    %v1561 = vunpack.c.l.b16 %v1464
    %v1562 = vunpack.c.l.b16 %v1465
    %v1563 = vunpack.c.l.b16 %v1466
    %v1564 = vunpack.c.l.b16 %v1467
    %v1565 = vunpack.c.l.b16 %v1468
    %v1566 = vunpack.c.l.b16 %v1469
    %v1567 = vunpack.c.l.b16 %v1470
    %v1568 = vunpack.c.l.b16 %v1471
    %v1569 = vunpack.c.l.b16 %v1472
    %v1570 = vunpack.c.l.b16 %v1473
    %v1571 = vunpack.c.l.b16 %v1474
    %v1572 = vunpack.c.l.b16 %v1475
    %v1573 = vunpack.c.l.b16 %v1476
    %v1574 = vunpack.c.l.b16 %v1477
    %v1575 = vunpack.c.l.b16 %v1478
    %v1576 = vunpack.c.l.b16 %v1479
    %v1577 = vunpack.c.l.b16 %v1480
    %v1578 = vunpack.c.l.b16 %v1481
    %v1579 = vunpack.c.l.b16 %v1482
    %v1580 = vunpack.c.l.b16 %v1483
    %v1581 = vunpack.c.l.b16 %v1484
    %v1582 = vunpack.c.l.b16 %v1485
    %v1583 = vunpack.c.l.b16 %v1486
    %v1584 = vunpack.c.l.b16 %v1487
    %v1585 = vunpack.c.l.b16 %v1488
    %v1586 = vunpack.c.l.b16 %v1489
    %v1587 = vunpack.c.l.b16 %v1490
    %v1588 = vunpack.c.l.b16 %v1491
    %v1589 = vunpack.c.l.b16 %v1492
    %v1590 = vunpack.c.l.b16 %v1493
    %v1591 = vunpack.c.l.b16 %v1494
    %v1592 = vunpack.c.l.b16 %v1495
    %v1593 = vunpack.c.l.b16 %v1496
    %v1594 = vunpack.c.l.b16 %v1497
    %v1595 = vunpack.c.l.b16 %v1498
    %v1596 = vunpack.c.l.b16 %v1499
    %v1597 = vpack.c.b16 %v1550, %v1549
    %v1598 = vpack.c.b16 %v1552, %v1551
    %v1599 = vpack.c.b16 %v1554, %v1553
    %v1600 = vpack.c.b16 %v1556, %v1555
    %v1601 = vpack.c.b16 %v1558, %v1557
    %v1602 = vpack.c.b16 %v1560, %v1559
    %v1603 = vpack.c.b16 %v1562, %v1561
    %v1604 = vpack.c.b16 %v1564, %v1563
    %v1605 = vpack.c.b16 %v1566, %v1565
    %v1606 = vpack.c.b16 %v1568, %v1567
    %v1607 = vpack.c.b16 %v1570, %v1569
    %v1608 = vpack.c.b16 %v1572, %v1571
    %v1609 = vpack.c.b16 %v1574, %v1573
    %v1610 = vpack.c.b16 %v1576, %v1575
    %v1611 = vpack.c.b16 %v1578, %v1577
    %v1612 = vpack.c.b16 %v1580, %v1579
    %v1613 = vpack.c.b16 %v1582, %v1581
    %v1614 = vpack.c.b16 %v1584, %v1583
    %v1615 = vpack.c.b16 %v1586, %v1585
    %v1616 = vpack.c.b16 %v1588, %v1587
    %v1617 = vpack.c.b16 %v1590, %v1589
    %v1618 = vpack.c.b16 %v1592, %v1591
    %v1619 = vpack.c.b16 %v1594, %v1593
    %v1620 = vpack.c.b16 %v1596, %v1595
    %1645 = vmatprep.subr.bf16.mxu0 0
    %1646 = vmatpush1.bf16.msra.mxu0 %v1604
    %1647 = vmatprep.subr.bf16.mxu0 0
    %1648 = vmatpush1.bf16.msra.mxu0 %v1603
    %1649 = vmatprep.subr.bf16.mxu0 0
    %1650 = vmatpush1.bf16.msra.mxu0 %v1602
    %1651 = vmatprep.subr.bf16.mxu0 0
    %1652 = vmatpush1.bf16.msra.mxu0 %v1601
    %1653 = vmatprep.subr.bf16.mxu0 0
    %1654 = vmatpush1.bf16.msra.mxu0 %v1600
    %1655 = vmatprep.subr.bf16.mxu0 0
    %1656 = vmatpush1.bf16.msra.mxu0 %v1599
    %1657 = vmatprep.subr.bf16.mxu0 0
    %1658 = vmatpush1.bf16.msra.mxu0 %v1598
    %1659 = vmatprep.subr.bf16.mxu0 0
    %1660 = vmatpush1.bf16.msra.mxu0 %v1597
    %1661 = vmatprep.subr.bf16.mxu0 0
    %1662 = vmatpush2.bf16.msra.mxu0 %v1612
    %1663 = vmatprep.subr.bf16.mxu0 0
    %1664 = vmatpush2.bf16.msra.mxu0 %v1611
    %1665 = vmatprep.subr.bf16.mxu0 0
    %1666 = vmatpush2.bf16.msra.mxu0 %v1610
    %1667 = vmatprep.subr.bf16.mxu0 0
    %1668 = vmatpush2.bf16.msra.mxu0 %v1609
    %1669 = vmatprep.subr.bf16.mxu0 0
    %1670 = vmatpush2.bf16.msra.mxu0 %v1608
    %1671 = vmatprep.subr.bf16.mxu0 0
    %1672 = vmatpush2.bf16.msra.mxu0 %v1607
    %1673 = vmatprep.subr.bf16.mxu0 0
    %1674 = vmatpush2.bf16.msra.mxu0 %v1606
    %1675 = vmatprep.subr.bf16.mxu0 0
    %1676 = vmatpush2.bf16.msra.mxu0 %v1605
    %1677 = vmatprep.mubr.bf16.mxu0 %v1450
    %1678 = vmatmul.mubr.bf16.gmra.mxu0 %v1449
    %v1679 = vpop.f32.mrf.mxu0
    %v1680 = vadd.f32 %v1500, %v1679
    %v1681 = vpop.f32.mrf.mxu0
    %v1682 = vpop.f32.mrf.mxu0
    %v1683 = vadd.f32 %v1500, %v1682
    %v1684 = vpop.f32.mrf.mxu0
    %1685 = vdwg.mxu0
    %1686 = vmatprep.subr.bf16.mxu0 0
    %1687 = vmatpush1.bf16.msra.mxu0 %v1620
    %1688 = vmatprep.subr.bf16.mxu0 0
    %1689 = vmatpush1.bf16.msra.mxu0 %v1619
    %1690 = vmatprep.subr.bf16.mxu0 0
    %1691 = vmatpush1.bf16.msra.mxu0 %v1618
    %1692 = vmatprep.subr.bf16.mxu0 0
    %1693 = vmatpush1.bf16.msra.mxu0 %v1617
    %1694 = vmatprep.subr.bf16.mxu0 0
    %1695 = vmatpush1.bf16.msra.mxu0 %v1616
    %1696 = vmatprep.subr.bf16.mxu0 0
    %1697 = vmatpush1.bf16.msra.mxu0 %v1615
    %1698 = vmatprep.subr.bf16.mxu0 0
    %1699 = vmatpush1.bf16.msra.mxu0 %v1614
    %1700 = vmatprep.subr.bf16.mxu0 0
    %1701 = vmatpush1.bf16.msra.mxu0 %v1613
    %1702 = vmatprep.subr.bf16.mxu0 0
    %1703 = vmatpush2.bf16.msra.mxu0 0
    %1704 = vmatprep.subr.bf16.mxu0 0
    %1705 = vmatpush2.bf16.msra.mxu0 0
    %1706 = vmatprep.subr.bf16.mxu0 0
    %1707 = vmatpush2.bf16.msra.mxu0 0
    %1708 = vmatprep.subr.bf16.mxu0 0
    %1709 = vmatpush2.bf16.msra.mxu0 0
    %1710 = vmatprep.subr.bf16.mxu0 0
    %1711 = vmatpush2.bf16.msra.mxu0 0
    %1712 = vmatprep.subr.bf16.mxu0 0
    %1713 = vmatpush2.bf16.msra.mxu0 0
    %1714 = vmatprep.subr.bf16.mxu0 0
    %1715 = vmatpush2.bf16.msra.mxu0 0
    %1716 = vmatprep.subr.bf16.mxu0 0
    %1717 = vmatpush2.bf16.msra.mxu0 0
    %1718 = vmatprep.mubr.bf16.mxu0 0
    %1719 = vmatmul.mubr.bf16.gmra.mxu0 %v1451
    %v1720 = vpop.f32.mrf.mxu0
    %v1721 = vadd.f32 %v1680, %v1720
    %v1722 = vpop.f32.mrf.mxu0
    %v1723 = vpop.f32.mrf.mxu0
    %v1724 = vadd.f32 %v1683, %v1723
    %v1725 = vpop.f32.mrf.mxu0
    %1726 = vdwg.mxu0
    %1727 = vst [vmem:[%s3] sm:$0xff] %v1721
    %1728 = vst [vmem:[%s3 + $0x8] sm:$0xff] %v1724
    // Predicated region
    $region18: #{bnn_mlp_forward.1} parent=1 // pred_check
      _
    $region19: #{bnn_mlp_forward.1} parent=1 // pred_check_branch
      %1730 = sbr.rel (0) target = $region21
    $region20: #{bnn_mlp_forward.1} parent=1 // pred_region
      _
    $region21: #{bnn_mlp_forward.1} parent=1 // pred_fallthru
      _
    // Predicated region
    $region22: #{bnn_mlp_forward.1} parent=1 // pred_check
      _
    $region23: #{bnn_mlp_forward.1} parent=1 // pred_check_branch
      %1732 = sbr.rel (0) target = $region25
    $region24: #{bnn_mlp_forward.1} parent=1 // pred_region
      _
    $region25: #{bnn_mlp_forward.1} parent=1 // pred_fallthru
      _
    %1733 = vsyncpa [#allocation3], 1

</llo_original>
